<compile_context>
chip_gen: v7x
topology: tpu7x:2x2x1
jax: 0.10.0
libtpu: 0.0.40
codegen_flags: <defaults>
</compile_context>

<pallas_src>
import functools

import jax
import jax.numpy as jnp
from jax.experimental import pallas as pl
from jax.experimental.pallas import tpu as pltpu

LANE = 128
ROW_TILE = 256  # node-row tile; n_p is rounded up to a multiple of this


def _round_up(x, m):
    return ((x + m - 1) // m) * m


def _pad2d(x, rows, cols):
    r, c = x.shape
    return jnp.pad(x, ((0, rows - r), (0, cols - c)))


@functools.lru_cache(maxsize=None)
def _vmem_budget_bytes():
    """3/4 of physical VMEM (96 MiB on v5e/v6e, 48 MiB on v7x); safe fallback 48 MiB."""
    phys = 64 * 1024 * 1024
    try:
        info = pltpu.get_tpu_info()
        phys = int(getattr(info, "vmem_capacity_bytes", phys))
    except Exception:
        pass
    return min((phys * 3) // 4, 112 * 1024 * 1024)


# ----------------------------------------------------------------------------
# Kernel 1: fused 2-layer MLP (Linear -> ReLU -> Linear), row-tiled.
# Inputs x/W1/W2 are bf16 (f32 accumulation); biases stay f32. Output is the
# bf16 h0 that seeds the propagation (halves the HBM round trip of h0).
# ----------------------------------------------------------------------------
def mlp_kernel(x_ref, w1_ref, b1_ref, w2_ref, b2_ref, h0_ref):
    h = jnp.dot(x_ref[...], w1_ref[...], preferred_element_type=jnp.float32)
    h = jnp.maximum(h + b1_ref[...], 0.0).astype(jnp.bfloat16)      # ReLU
    o = jnp.dot(h, w2_ref[...], preferred_element_type=jnp.float32)
    h0_ref[...] = (o + b2_ref[...]).astype(jnp.bfloat16)


def mlp_forward(x_p, w1_p, b1_p, w2_p, b2_p, *, tm, vmem_limit):
    n_p, f_p = x_p.shape
    h_p = w1_p.shape[1]
    c_p = w2_p.shape[1]
    return pl.pallas_call(
        mlp_kernel,
        out_shape=jax.ShapeDtypeStruct((n_p, c_p), jnp.bfloat16),
        grid_spec=pltpu.PrefetchScalarGridSpec(
            num_scalar_prefetch=0,
            grid=(n_p // tm,),
            in_specs=[
                pl.BlockSpec((tm, f_p), lambda i: (i, 0)),   # x row tile (bf16)
                pl.BlockSpec((f_p, h_p), lambda i: (0, 0)),  # W1 resident (bf16)
                pl.BlockSpec((1, h_p), lambda i: (0, 0)),    # b1 (f32)
                pl.BlockSpec((h_p, c_p), lambda i: (0, 0)),  # W2 resident (bf16)
                pl.BlockSpec((1, c_p), lambda i: (0, 0)),    # b2 (f32)
            ],
            out_specs=pl.BlockSpec((tm, c_p), lambda i: (i, 0)),
        ),
        compiler_params=pltpu.CompilerParams(
            dimension_semantics=("parallel",),               # megacore shardable
            vmem_limit_bytes=vmem_limit,
        ),
    )(x_p, w1_p, b1_p, w2_p, b2_p)


# ----------------------------------------------------------------------------
# Kernel 2: APPNP propagation.
# grid = (k+1, N//tm):  j==0 initializes the bf16 iterate from the streamed h0
# row tiles; j=1..k performs  h <- A_scaled @ h + alpha*h0  where A_scaled has
# (1-alpha) pre-folded in.  The iterate lives in a ping-pong VMEM scratch; A is
# either fully VMEM-resident (DMA'd once) or streamed as bf16 row slabs.
# Output is row-tiled and written every step (lane-dense, never uninitialized).
# ----------------------------------------------------------------------------
def appnp_kernel(a_ref, h0_ref, o_ref, hbuf, *, alpha, tm, a_resident):
    j = pl.program_id(0)              # 0 = init, 1..k = propagation iterations
    i = pl.program_id(1)              # node-row tile

    row0 = pl.multiple_of(i * tm, tm)
    rows = pl.ds(row0, tm)

    h0_f32 = h0_ref[...].astype(jnp.float32)

    @pl.when(j == 0)
    def _init():
        hbuf[0, rows, :] = h0_ref[...]
        o_ref[...] = h0_f32

    def step(src, dst):
        # TODO(synk): edge_drop is a training-time Dropout on A_hat entries;
        # identity here (eval mode).
        a_slab = a_ref[rows, :] if a_resident else a_ref[...]
        prop = jnp.dot(a_slab, hbuf[src], preferred_element_type=jnp.float32)
        new_h = prop + alpha * h0_f32            # (1 - alpha) folded into A
        hbuf[dst, rows, :] = new_h.astype(jnp.bfloat16)
        o_ref[...] = new_h

    # static ping-pong slots (avoid dynamic-slot matmul operands)
    @pl.when(j % 2 == 1)
    def _odd():                                   # j = 1, 3, ...
        step(0, 1)

    @pl.when(jnp.logical_and(j >= 2, j % 2 == 0))
    def _even():                                  # j = 2, 4, ...
        step(1, 0)


def appnp_forward(a_p, h0_p, *, k, alpha, tm, vmem_limit, a_resident):
    n_p, c_p = h0_p.shape
    kern = functools.partial(appnp_kernel, alpha=alpha, tm=tm, a_resident=a_resident)

    if a_resident:
        # whole A stays in VMEM: DMA'd exactly once instead of k times.
        a_spec = pl.BlockSpec((n_p, n_p), lambda j, i: (0, 0))
    else:
        # streamed bf16 row slabs, double-buffered by Pallas; during the init
        # pass (j==0) the block index is pinned to 0 so no A bytes are wasted.
        a_spec = pl.BlockSpec((tm, n_p), lambda j, i: (i * jnp.minimum(j, 1), 0))

    return pl.pallas_call(
        kern,
        out_shape=jax.ShapeDtypeStruct((n_p, c_p), jnp.float32),
        grid_spec=pltpu.PrefetchScalarGridSpec(
            num_scalar_prefetch=0,
            grid=(k + 1, n_p // tm),
            in_specs=[
                a_spec,
                pl.BlockSpec((tm, c_p), lambda j, i: (i, 0)),   # h0 bf16 row tile
            ],
            out_specs=pl.BlockSpec((tm, c_p), lambda j, i: (i, 0)),
            scratch_shapes=[
                pltpu.VMEM((2, n_p, c_p), jnp.bfloat16),        # ping-pong iterate
            ],
        ),
        compiler_params=pltpu.CompilerParams(
            # i axis must NOT be 'parallel': hbuf carries cross-row-tile state.
            dimension_semantics=("arbitrary", "arbitrary"),
            vmem_limit_bytes=vmem_limit,
        ),
    )(a_p, h0_p)


# ----------------------------------------------------------------------------
# Graph prep (done ONCE, outside the per-call forward): fold (1-alpha) into A,
# zero-pad to tile-aligned shape, cast to bf16.
# ----------------------------------------------------------------------------
def prepare_graph(a_hat, *, alpha, row_tile=ROW_TILE):
    n = a_hat.shape[0]
    n_p = _round_up(n, row_tile)
    a = (1.0 - alpha) * a_hat
    return _pad2d(a, n_p, n_p).astype(jnp.bfloat16)


def _pick_prop_tile(n_p, c_p, budget):
    # streamed-A case: pick the largest row tile whose double-buffered slabs fit.
    for tm in (256, 128, 64, 32, 16, 8):
        if n_p % tm:
            continue
        need = 2 * tm * n_p * 2 + 2 * n_p * c_p * 2 + 4 * tm * c_p * 6 + (2 << 20)
        if need <= budget:
            return tm
    return 8


# ----------------------------------------------------------------------------
# Full model wrapper (parameter/layout plumbing in plain JAX)
# ----------------------------------------------------------------------------
def gnn_forward(a_scaled_p, x, params, *, k, alpha):
    n, f_in = x.shape
    h_dim = params["w1"].shape[1]
    c = params["w2"].shape[1]
    n_p = a_scaled_p.shape[0]

    f_p = _round_up(f_in, LANE)
    h_p = _round_up(h_dim, LANE)
    c_p = _round_up(c, LANE)
    tm_mlp = min(ROW_TILE, n_p)

    # Zero-pad to lane-dense / tile-aligned shapes (padding is exact: padded
    # lanes/rows carry zeros through both kernels) and cast streams to bf16.
    x_p = _pad2d(x, n_p, f_p).astype(jnp.bfloat16)
    w1_p = _pad2d(params["w1"], f_p, h_p).astype(jnp.bfloat16)
    b1_p = _pad2d(params["b1"], 1, h_p)
    w2_p = _pad2d(params["w2"], h_p, c_p).astype(jnp.bfloat16)
    b2_p = _pad2d(params["b2"], 1, c_p)

    budget = _vmem_budget_bytes()
    resident_need = n_p * n_p * 2 + 2 * n_p * c_p * 2 + (4 << 20)
    a_resident = resident_need <= budget
    tm_prop = min(ROW_TILE, n_p) if a_resident else _pick_prop_tile(n_p, c_p, budget)

    # TODO(synk): for very large graphs the full bf16 iterate (2*N*128) no longer
    # fits VMEM; that regime needs a column-blocked A with an HBM round trip of h.
    h0 = mlp_forward(x_p, w1_p, b1_p, w2_p, b2_p, tm=tm_mlp, vmem_limit=budget)
    out_p = appnp_forward(a_scaled_p, h0, k=k, alpha=alpha, tm=tm_prop,
                          vmem_limit=budget, a_resident=a_resident)
    return out_p[:n, :c]


def init_params(key, in_feats, n_hidden, n_classes):
    # Deterministic init mimicking nn.Linear.reset_parameters (uniform +/- 1/sqrt(fan_in)).
    k1, k2, k3, k4 = jax.random.split(key, 4)
    lim1 = 1.0 / jnp.sqrt(in_feats)
    lim2 = 1.0 / jnp.sqrt(n_hidden)
    return {
        # stored already transposed to [in, out] so the kernel does x @ W
        "w1": jax.random.uniform(k1, (in_feats, n_hidden), jnp.float32, -lim1, lim1),
        "b1": jax.random.uniform(k2, (1, n_hidden), jnp.float32, -lim1, lim1),
        "w2": jax.random.uniform(k3, (n_hidden, n_classes), jnp.float32, -lim2, lim2),
        "b2": jax.random.uniform(k4, (1, n_classes), jnp.float32, -lim2, lim2),
    }


def make_normalized_adjacency(key, n_nodes, p_edge=0.15):
    # Random undirected graph with self-loops, symmetric normalization
    # A_hat = D^{-1/2} A D^{-1/2}  (dense; graph glue stays in plain JAX).
    u = jax.random.uniform(key, (n_nodes, n_nodes))
    a = (u < p_edge).astype(jnp.float32)
    a = jnp.maximum(a, a.T)                       # symmetrize
    a = jnp.maximum(a, jnp.eye(n_nodes))          # self loops
    deg = jnp.clip(a.sum(axis=1), 1.0, None)
    d_inv_sqrt = 1.0 / jnp.sqrt(deg)
    return a * d_inv_sqrt[:, None] * d_inv_sqrt[None, :]


if __name__ == "__main__":
    # Small synthetic shapes consistent with the module's forward.
    N_NODES, IN_FEATS, N_HIDDEN, N_CLASSES = 256, 32, 64, 8
    ALPHA, K = 0.1, 10

    root = jax.random.PRNGKey(0)
    k_x, k_g, k_p = jax.random.split(root, 3)

    x = jax.random.normal(k_x, (N_NODES, IN_FEATS), jnp.float32)
    a_hat = make_normalized_adjacency(k_g, N_NODES)
    params = init_params(k_p, IN_FEATS, N_HIDDEN, N_CLASSES)

    # Graph prep hoisted out of the forward: pad + (1-alpha) fold + bf16, once.
    a_scaled = jax.block_until_ready(prepare_graph(a_hat, alpha=ALPHA))

    fwd = jax.jit(functools.partial(gnn_forward, k=K, alpha=ALPHA))
    out = jax.block_until_ready(fwd(a_scaled, x, params))

    # pure-JAX f32 reference (kernel uses bf16 x/W/A/h -> loose tolerance)
    h_ref = jnp.maximum(x @ params["w1"] + params["b1"], 0.0)
    h_ref = h_ref @ params["w2"] + params["b2"]
    h0_ref = h_ref
    for _ in range(K):
        h_ref = (1.0 - ALPHA) * (a_hat @ h_ref) + ALPHA * h0_ref

    assert out.shape == (N_NODES, N_CLASSES)
    assert bool(jnp.all(jnp.isfinite(out)))
    max_err = float(jnp.max(jnp.abs(out - h_ref)))
    assert max_err < 0.1, f"max abs error {max_err}"
    print("KERNEL_OK")
</pallas_src>

<mosaic_0001>
module attributes {stable_mosaic.version = 11 : i64} {
  func.func @mlp_kernel(%arg0: i32, %arg1: memref<256x128xbf16, #tpu.memory_space<vmem>>, %arg2: memref<128x128xbf16, #tpu.memory_space<vmem>>, %arg3: memref<1x128xf32, #tpu.memory_space<vmem>>, %arg4: memref<128x128xbf16, #tpu.memory_space<vmem>>, %arg5: memref<1x128xf32, #tpu.memory_space<vmem>>, %arg6: memref<256x128xbf16, #tpu.memory_space<vmem>>) attributes {dimension_semantics = [#tpu.dimension_semantics<parallel>], iteration_bounds = array<i64: 1>, scalar_prefetch = 0 : i64, scratch_operands = 0 : i64, tpu.core_type = #tpu.core_type<tc>, window_params = [{transform_indices = @transform_0, window_bounds = array<i64: 256, 128>}, {pipeline_mode = #tpu.pipeline_mode<synchronous>, transform_indices = @transform_1, window_bounds = array<i64: 128, 128>}, {pipeline_mode = #tpu.pipeline_mode<synchronous>, transform_indices = @transform_2, window_bounds = array<i64: 1, 128>}, {pipeline_mode = #tpu.pipeline_mode<synchronous>, transform_indices = @transform_3, window_bounds = array<i64: 128, 128>}, {pipeline_mode = #tpu.pipeline_mode<synchronous>, transform_indices = @transform_4, window_bounds = array<i64: 1, 128>}, {transform_indices = @transform_5, window_bounds = array<i64: 256, 128>}]} {
    %c0 = arith.constant 0 : index
    %c0_0 = arith.constant 0 : index
    %0 = vector.load %arg1[%c0, %c0_0] : memref<256x128xbf16, #tpu.memory_space<vmem>>, vector<256x128xbf16>
    %c0_1 = arith.constant 0 : index
    %c0_2 = arith.constant 0 : index
    %1 = vector.load %arg2[%c0_1, %c0_2] : memref<128x128xbf16, #tpu.memory_space<vmem>>, vector<128x128xbf16>
    %cst = arith.constant dense<0.000000e+00> : vector<256x128xf32>
    %2 = tpu.matmul %0, %1, %cst {dimension_numbers = #tpu.dot_dimension_numbers<[1], [0], [0], [1], [0, 0, 1, 1], [], []>} : vector<256x128xbf16>, vector<128x128xbf16>, vector<256x128xf32> -> vector<256x128xf32>
    %c0_3 = arith.constant 0 : index
    %c0_4 = arith.constant 0 : index
    %3 = vector.load %arg3[%c0_3, %c0_4] : memref<1x128xf32, #tpu.memory_space<vmem>>, vector<1x128xf32>
    %4 = vector.broadcast %3 : vector<1x128xf32> to vector<256x128xf32>
    %5 = arith.addf %2, %4 : vector<256x128xf32>
    %cst_5 = arith.constant 0.000000e+00 : f32
    %6 = vector.broadcast %cst_5 : f32 to vector<256x128xf32>
    %7 = arith.maximumf %5, %6 : vector<256x128xf32>
    %8 = arith.truncf %7 : vector<256x128xf32> to vector<256x128xbf16>
    %c0_6 = arith.constant 0 : index
    %c0_7 = arith.constant 0 : index
    %9 = vector.load %arg4[%c0_6, %c0_7] : memref<128x128xbf16, #tpu.memory_space<vmem>>, vector<128x128xbf16>
    %cst_8 = arith.constant dense<0.000000e+00> : vector<256x128xf32>
    %10 = tpu.matmul %8, %9, %cst_8 {dimension_numbers = #tpu.dot_dimension_numbers<[1], [0], [0], [1], [0, 0, 1, 1], [], []>} : vector<256x128xbf16>, vector<128x128xbf16>, vector<256x128xf32> -> vector<256x128xf32>
    %c0_9 = arith.constant 0 : index
    %c0_10 = arith.constant 0 : index
    %11 = vector.load %arg5[%c0_9, %c0_10] : memref<1x128xf32, #tpu.memory_space<vmem>>, vector<1x128xf32>
    %12 = vector.broadcast %11 : vector<1x128xf32> to vector<256x128xf32>
    %13 = arith.addf %10, %12 : vector<256x128xf32>
    %14 = arith.truncf %13 : vector<256x128xf32> to vector<256x128xbf16>
    %c0_11 = arith.constant 0 : index
    %c0_12 = arith.constant 0 : index
    %15 = vector.load %arg6[%c0_11, %c0_12] : memref<256x128xbf16, #tpu.memory_space<vmem>>, vector<256x128xbf16>
    tpu.vector_store %arg6[%c0_11, %c0_12], %14 {strides = array<i32>} : memref<256x128xbf16, #tpu.memory_space<vmem>>, vector<256x128xbf16>,
    return
  }
  func.func @transform_0(%arg0: i32) -> (i32, i32) {
    %c0_i32 = arith.constant 0 : i32
    %c0_i32_0 = arith.constant 0 : i32
    return %arg0, %c0_i32 : i32, i32
  }
  func.func @transform_1(%arg0: i32) -> (i32, i32) {
    %c0_i32 = arith.constant 0 : i32
    %c0_i32_0 = arith.constant 0 : i32
    %c0_i32_1 = arith.constant 0 : i32
    return %c0_i32, %c0_i32_0 : i32, i32
  }
  func.func @transform_2(%arg0: i32) -> (i32, i32) {
    %c0_i32 = arith.constant 0 : i32
    %c0_i32_0 = arith.constant 0 : i32
    %c0_i32_1 = arith.constant 0 : i32
    return %c0_i32, %c0_i32_0 : i32, i32
  }
  func.func @transform_3(%arg0: i32) -> (i32, i32) {
    %c0_i32 = arith.constant 0 : i32
    %c0_i32_0 = arith.constant 0 : i32
    %c0_i32_1 = arith.constant 0 : i32
    return %c0_i32, %c0_i32_0 : i32, i32
  }
  func.func @transform_4(%arg0: i32) -> (i32, i32) {
    %c0_i32 = arith.constant 0 : i32
    %c0_i32_0 = arith.constant 0 : i32
    %c0_i32_1 = arith.constant 0 : i32
    return %c0_i32, %c0_i32_0 : i32, i32
  }
  func.func @transform_5(%arg0: i32) -> (i32, i32) {
    %c0_i32 = arith.constant 0 : i32
    %c0_i32_0 = arith.constant 0 : i32
    return %arg0, %c0_i32 : i32, i32
  }
}

module attributes {stable_mosaic.version = 11 : i64} {
  func.func @appnp_kernel(%arg0: i32, %arg1: i32, %arg2: memref<256x256xbf16, #tpu.memory_space<vmem>>, %arg3: memref<256x128xbf16, #tpu.memory_space<vmem>>, %arg4: memref<256x128xf32, #tpu.memory_space<vmem>>, %arg5: memref<2x256x128xbf16, #tpu.memory_space<vmem>>) attributes {dimension_semantics = [#tpu.dimension_semantics<arbitrary>, #tpu.dimension_semantics<arbitrary>], iteration_bounds = array<i64: 11, 1>, scalar_prefetch = 0 : i64, scratch_operands = 1 : i64, tpu.core_type = #tpu.core_type<tc>, window_params = [{pipeline_mode = #tpu.pipeline_mode<synchronous>, transform_indices = @transform_0, window_bounds = array<i64: 256, 256>}, {transform_indices = @transform_1, window_bounds = array<i64: 256, 128>}, {transform_indices = @transform_2, window_bounds = array<i64: 256, 128>}]} {
    %c256_i32 = arith.constant 256 : i32
    %0 = arith.muli %arg1, %c256_i32 : i32
    %1 = tpu.assume_multiple %0, 256 : i32
    %c0 = arith.constant 0 : index
    %c0_0 = arith.constant 0 : index
    %2 = vector.load %arg3[%c0, %c0_0] : memref<256x128xbf16, #tpu.memory_space<vmem>>, vector<256x128xbf16>
    %3 = arith.extf %2 : vector<256x128xbf16> to vector<256x128xf32>
    %c0_i32 = arith.constant 0 : i32
    %4 = arith.cmpi eq, %arg0, %c0_i32 : i32
    %5 = arith.extui %4 : i1 to i32
    %c0_i32_1 = arith.constant 0 : i32
    %6 = arith.cmpi ne, %5, %c0_i32_1 : i32
    scf.if %6 {
      %c0_17 = arith.constant 0 : index
      %c0_18 = arith.constant 0 : index
      %35 = vector.load %arg3[%c0_17, %c0_18] : memref<256x128xbf16, #tpu.memory_space<vmem>>, vector<256x128xbf16>
      %c0_19 = arith.constant 0 : index
      %36 = arith.index_cast %1 : i32 to index
      %c0_20 = arith.constant 0 : index
      %37 = vector.load %arg5[%c0_19, %36, %c0_20] : memref<2x256x128xbf16, #tpu.memory_space<vmem>>, vector<1x256x128xbf16>
      %38 = vector.shape_cast %37 : vector<1x256x128xbf16> to vector<256x128xbf16>
      %39 = vector.shape_cast %35 : vector<256x128xbf16> to vector<1x256x128xbf16>
      tpu.vector_store %arg5[%c0_19, %36, %c0_20], %39 {strides = array<i32>} : memref<2x256x128xbf16, #tpu.memory_space<vmem>>, vector<1x256x128xbf16>,
      %c0_21 = arith.constant 0 : index
      %c0_22 = arith.constant 0 : index
      %40 = vector.load %arg4[%c0_21, %c0_22] : memref<256x128xf32, #tpu.memory_space<vmem>>, vector<256x128xf32>
      tpu.vector_store %arg4[%c0_21, %c0_22], %3 {strides = array<i32>} : memref<256x128xf32, #tpu.memory_space<vmem>>, vector<256x128xf32>,
    } else {
    }
    %c2_i32 = arith.constant 2 : i32
    %c0_i32_2 = arith.constant 0 : i32
    %7 = arith.cmpi eq, %c2_i32, %c0_i32_2 : i32
    %c1_i32 = arith.constant 1 : i32
    %8 = arith.select %7, %c1_i32, %c2_i32 : i32
    %9 = arith.remsi %arg0, %8 : i32
    %c0_i32_3 = arith.constant 0 : i32
    %10 = arith.cmpi ne, %9, %c0_i32_3 : i32
    %c0_i32_4 = arith.constant 0 : i32
    %11 = arith.cmpi slt, %9, %c0_i32_4 : i32
    %c0_i32_5 = arith.constant 0 : i32
    %12 = arith.cmpi slt, %8, %c0_i32_5 : i32
    %13 = arith.xori %11, %12 : i1
    %14 = arith.andi %13, %10 : i1
    %15 = arith.addi %9, %8 : i32
    %16 = arith.select %14, %15, %9 : i32
    %c1_i32_6 = arith.constant 1 : i32
    %17 = arith.cmpi eq, %16, %c1_i32_6 : i32
    %18 = arith.extui %17 : i1 to i32
    %c0_i32_7 = arith.constant 0 : i32
    %19 = arith.cmpi ne, %18, %c0_i32_7 : i32
    scf.if %19 {
      %35 = arith.index_cast %1 : i32 to index
      %c0_17 = arith.constant 0 : index
      %36 = vector.load %arg2[%35, %c0_17] : memref<256x256xbf16, #tpu.memory_space<vmem>>, vector<256x256xbf16>
      %c0_18 = arith.constant 0 : index
      %c0_19 = arith.constant 0 : index
      %c0_20 = arith.constant 0 : index
      %37 = vector.load %arg5[%c0_18, %c0_19, %c0_20] : memref<2x256x128xbf16, #tpu.memory_space<vmem>>, vector<1x256x128xbf16>
      %38 = vector.shape_cast %37 : vector<1x256x128xbf16> to vector<256x128xbf16>
      %cst = arith.constant dense<0.000000e+00> : vector<256x128xf32>
      %39 = tpu.matmul %36, %38, %cst {dimension_numbers = #tpu.dot_dimension_numbers<[1], [0], [0], [1], [0, 0, 1, 1], [], []>} : vector<256x256xbf16>, vector<256x128xbf16>, vector<256x128xf32> -> vector<256x128xf32>
      %cst_21 = arith.constant 1.000000e-01 : f32
      %40 = vector.broadcast %cst_21 : f32 to vector<256x128xf32>
      %41 = arith.mulf %40, %3 : vector<256x128xf32>
      %42 = arith.addf %39, %41 : vector<256x128xf32>
      %43 = arith.truncf %42 : vector<256x128xf32> to vector<256x128xbf16>
      %c1 = arith.constant 1 : index
      %44 = arith.index_cast %1 : i32 to index
      %c0_22 = arith.constant 0 : index
      %45 = vector.load %arg5[%c1, %44, %c0_22] : memref<2x256x128xbf16, #tpu.memory_space<vmem>>, vector<1x256x128xbf16>
      %46 = vector.shape_cast %45 : vector<1x256x128xbf16> to vector<256x128xbf16>
      %47 = vector.shape_cast %43 : vector<256x128xbf16> to vector<1x256x128xbf16>
      tpu.vector_store %arg5[%c1, %44, %c0_22], %47 {strides = array<i32>} : memref<2x256x128xbf16, #tpu.memory_space<vmem>>, vector<1x256x128xbf16>,
      %c0_23 = arith.constant 0 : index
      %c0_24 = arith.constant 0 : index
      %48 = vector.load %arg4[%c0_23, %c0_24] : memref<256x128xf32, #tpu.memory_space<vmem>>, vector<256x128xf32>
      tpu.vector_store %arg4[%c0_23, %c0_24], %42 {strides = array<i32>} : memref<256x128xf32, #tpu.memory_space<vmem>>, vector<256x128xf32>,
    } else {
    }
    %c2_i32_8 = arith.constant 2 : i32
    %20 = arith.cmpi sge, %arg0, %c2_i32_8 : i32
    %c2_i32_9 = arith.constant 2 : i32
    %c0_i32_10 = arith.constant 0 : i32
    %21 = arith.cmpi eq, %c2_i32_9, %c0_i32_10 : i32
    %c1_i32_11 = arith.constant 1 : i32
    %22 = arith.select %21, %c1_i32_11, %c2_i32_9 : i32
    %23 = arith.remsi %arg0, %22 : i32
    %c0_i32_12 = arith.constant 0 : i32
    %24 = arith.cmpi ne, %23, %c0_i32_12 : i32
    %c0_i32_13 = arith.constant 0 : i32
    %25 = arith.cmpi slt, %23, %c0_i32_13 : i32
    %c0_i32_14 = arith.constant 0 : i32
    %26 = arith.cmpi slt, %22, %c0_i32_14 : i32
    %27 = arith.xori %25, %26 : i1
    %28 = arith.andi %27, %24 : i1
    %29 = arith.addi %23, %22 : i32
    %30 = arith.select %28, %29, %23 : i32
    %c0_i32_15 = arith.constant 0 : i32
    %31 = arith.cmpi eq, %30, %c0_i32_15 : i32
    %32 = arith.andi %20, %31 : i1
    %33 = arith.extui %32 : i1 to i32
    %c0_i32_16 = arith.constant 0 : i32
    %34 = arith.cmpi ne, %33, %c0_i32_16 : i32
    scf.if %34 {
      %35 = arith.index_cast %1 : i32 to index
      %c0_17 = arith.constant 0 : index
      %36 = vector.load %arg2[%35, %c0_17] : memref<256x256xbf16, #tpu.memory_space<vmem>>, vector<256x256xbf16>
      %c1 = arith.constant 1 : index
      %c0_18 = arith.constant 0 : index
      %c0_19 = arith.constant 0 : index
      %37 = vector.load %arg5[%c1, %c0_18, %c0_19] : memref<2x256x128xbf16, #tpu.memory_space<vmem>>, vector<1x256x128xbf16>
      %38 = vector.shape_cast %37 : vector<1x256x128xbf16> to vector<256x128xbf16>
      %cst = arith.constant dense<0.000000e+00> : vector<256x128xf32>
      %39 = tpu.matmul %36, %38, %cst {dimension_numbers = #tpu.dot_dimension_numbers<[1], [0], [0], [1], [0, 0, 1, 1], [], []>} : vector<256x256xbf16>, vector<256x128xbf16>, vector<256x128xf32> -> vector<256x128xf32>
      %cst_20 = arith.constant 1.000000e-01 : f32
      %40 = vector.broadcast %cst_20 : f32 to vector<256x128xf32>
      %41 = arith.mulf %40, %3 : vector<256x128xf32>
      %42 = arith.addf %39, %41 : vector<256x128xf32>
      %43 = arith.truncf %42 : vector<256x128xf32> to vector<256x128xbf16>
      %c0_21 = arith.constant 0 : index
      %44 = arith.index_cast %1 : i32 to index
      %c0_22 = arith.constant 0 : index
      %45 = vector.load %arg5[%c0_21, %44, %c0_22] : memref<2x256x128xbf16, #tpu.memory_space<vmem>>, vector<1x256x128xbf16>
      %46 = vector.shape_cast %45 : vector<1x256x128xbf16> to vector<256x128xbf16>
      %47 = vector.shape_cast %43 : vector<256x128xbf16> to vector<1x256x128xbf16>
      tpu.vector_store %arg5[%c0_21, %44, %c0_22], %47 {strides = array<i32>} : memref<2x256x128xbf16, #tpu.memory_space<vmem>>, vector<1x256x128xbf16>,
      %c0_23 = arith.constant 0 : index
      %c0_24 = arith.constant 0 : index
      %48 = vector.load %arg4[%c0_23, %c0_24] : memref<256x128xf32, #tpu.memory_space<vmem>>, vector<256x128xf32>
      tpu.vector_store %arg4[%c0_23, %c0_24], %42 {strides = array<i32>} : memref<256x128xf32, #tpu.memory_space<vmem>>, vector<256x128xf32>,
    } else {
    }
    return
  }
  func.func @transform_0(%arg0: i32, %arg1: i32) -> (i32, i32) {
    %c0_i32 = arith.constant 0 : i32
    %c0_i32_0 = arith.constant 0 : i32
    %c0_i32_1 = arith.constant 0 : i32
    return %c0_i32, %c0_i32_0 : i32, i32
  }
  func.func @transform_1(%arg0: i32, %arg1: i32) -> (i32, i32) {
    %c0_i32 = arith.constant 0 : i32
    %c0_i32_0 = arith.constant 0 : i32
    return %arg1, %c0_i32 : i32, i32
  }
  func.func @transform_2(%arg0: i32, %arg1: i32) -> (i32, i32) {
    %c0_i32 = arith.constant 0 : i32
    %c0_i32_0 = arith.constant 0 : i32
    return %arg1, %c0_i32 : i32, i32
  }
}

</mosaic_0001>

<llo_original>
// kernel: gnn_forward.2
$region0: #{gnn_forward.2}
  #allocation0 [shape = 'u32[]', space=smem, size = 0x4, offset = 0x4, fixed_abs, tag = 'smem constant byte address 0x4 - core index']
  #allocation1 [shape = 'u32[144,128]{1,0:T(1,128)}', space=vmem, size = 0x12000, scoped, tag = 'internal scratch']
  %s0 = inlined_call_operand.vmem [shape: bf16[256,128], index: 0, kind: input, shape index: {}]
  %s1 = inlined_call_operand.vmem [shape: bf16[128,128], index: 1, kind: input, shape index: {}]
  %s2 = inlined_call_operand.vmem [shape: f32[1,128], index: 2, kind: input, shape index: {}]
  %s3 = inlined_call_operand.vmem [shape: bf16[128,128], index: 3, kind: input, shape index: {}]
  %s4 = inlined_call_operand.vmem [shape: f32[1,128], index: 4, kind: input, shape index: {}]
  %s5 = inlined_call_operand.vmem [shape: bf16[256,128], index: 5, kind: output, shape index: {}]
  %s6 = sld [smem:[#allocation0]]
  $region30: #{gnn_forward.2} parent=0
    _
  %s8 = ssub.s32 1, %s6
  %s9 = scalar_select 0, %s8, %s6
  // Predicated region
  $region2: #{gnn_forward.2} parent=0 // pred_check
    _
  $region3: #{gnn_forward.2} parent=0 // pred_check_branch
    %11 = sbr.rel (0) target = $region5
  $region4: #{gnn_forward.2} parent=0 // pred_region
    _
  $region5: #{gnn_forward.2} parent=0 // pred_fallthru
    _
  // Predicated region
  $region6: #{gnn_forward.2} parent=0 // pred_check
    _
  $region7: #{gnn_forward.2} parent=0 // pred_check_branch
    %13 = sbr.rel (0) target = $region9
  $region8: #{gnn_forward.2} parent=0 // pred_region
    _
  $region9: #{gnn_forward.2} parent=0 // pred_fallthru
    _
  // Predicated region
  $region10: #{gnn_forward.2} parent=0 // pred_check
    _
  $region11: #{gnn_forward.2} parent=0 // pred_check_branch
    %15 = sbr.rel (0) target = $region13
  $region12: #{gnn_forward.2} parent=0 // pred_region
    _
  $region13: #{gnn_forward.2} parent=0 // pred_fallthru
    _
  // Predicated region
  $region14: #{gnn_forward.2} parent=0 // pred_check
    _
  $region15: #{gnn_forward.2} parent=0 // pred_check_branch
    %17 = sbr.rel (0) target = $region17
  $region16: #{gnn_forward.2} parent=0 // pred_region
    _
  $region17: #{gnn_forward.2} parent=0 // pred_fallthru
    _
  // Predicated region
  $region18: #{gnn_forward.2} parent=0 // pred_check
    _
  $region19: #{gnn_forward.2} parent=0 // pred_check_branch
    %19 = sbr.rel (0) target = $region21
  $region20: #{gnn_forward.2} parent=0 // pred_region
    _
  $region21: #{gnn_forward.2} parent=0 // pred_fallthru
    _
  %v21 = vld [vmem:[%s0] sm:$0xf]
  %v22 = vld [vmem:[%s0 + $0x4] sm:$0xf]
  %v23 = vld [vmem:[%s0 + $0x8] sm:$0xf]
  %v24 = vld [vmem:[%s0 + $0xc] sm:$0xf]
  %v25 = vld [vmem:[%s0 + $0x10] sm:$0xf]
  %v26 = vld [vmem:[%s0 + $0x14] sm:$0xf]
  %v27 = vld [vmem:[%s0 + $0x18] sm:$0xf]
  %v28 = vld [vmem:[%s0 + $0x1c] sm:$0xf]
  %v29 = vld [vmem:[%s0 + $0x20] sm:$0xf]
  %v30 = vld [vmem:[%s0 + $0x24] sm:$0xf]
  %v31 = vld [vmem:[%s0 + $0x28] sm:$0xf]
  %v32 = vld [vmem:[%s0 + $0x2c] sm:$0xf]
  %v33 = vld [vmem:[%s0 + $0x30] sm:$0xf]
  %v34 = vld [vmem:[%s0 + $0x34] sm:$0xf]
  %v35 = vld [vmem:[%s0 + $0x38] sm:$0xf]
  %v36 = vld [vmem:[%s0 + $0x3c] sm:$0xf]
  %v37 = vld [vmem:[%s0 + $0x40] sm:$0xf]
  %v38 = vld [vmem:[%s0 + $0x44] sm:$0xf]
  %v39 = vld [vmem:[%s0 + $0x48] sm:$0xf]
  %v40 = vld [vmem:[%s0 + $0x4c] sm:$0xf]
  %v41 = vld [vmem:[%s0 + $0x50] sm:$0xf]
  %v42 = vld [vmem:[%s0 + $0x54] sm:$0xf]
  %v43 = vld [vmem:[%s0 + $0x58] sm:$0xf]
  %v44 = vld [vmem:[%s0 + $0x5c] sm:$0xf]
  %v45 = vld [vmem:[%s0 + $0x60] sm:$0xf]
  %v46 = vld [vmem:[%s0 + $0x64] sm:$0xf]
  %v47 = vld [vmem:[%s0 + $0x68] sm:$0xf]
  %v48 = vld [vmem:[%s0 + $0x6c] sm:$0xf]
  %v49 = vld [vmem:[%s0 + $0x70] sm:$0xf]
  %v50 = vld [vmem:[%s0 + $0x74] sm:$0xf]
  %v51 = vld [vmem:[%s0 + $0x78] sm:$0xf]
  %v52 = vld [vmem:[%s0 + $0x7c] sm:$0xf]
  %v53 = vld [vmem:[%s1] sm:$0xf]
  %v54 = vld [vmem:[%s1 + $0x4] sm:$0xf]
  %v55 = vld [vmem:[%s1 + $0x8] sm:$0xf]
  %v56 = vld [vmem:[%s1 + $0xc] sm:$0xf]
  %v57 = vld [vmem:[%s1 + $0x10] sm:$0xf]
  %v58 = vld [vmem:[%s1 + $0x14] sm:$0xf]
  %v59 = vld [vmem:[%s1 + $0x18] sm:$0xf]
  %v60 = vld [vmem:[%s1 + $0x1c] sm:$0xf]
  %v61 = vld [vmem:[%s1 + $0x20] sm:$0xf]
  %v62 = vld [vmem:[%s1 + $0x24] sm:$0xf]
  %v63 = vld [vmem:[%s1 + $0x28] sm:$0xf]
  %v64 = vld [vmem:[%s1 + $0x2c] sm:$0xf]
  %v65 = vld [vmem:[%s1 + $0x30] sm:$0xf]
  %v66 = vld [vmem:[%s1 + $0x34] sm:$0xf]
  %v67 = vld [vmem:[%s1 + $0x38] sm:$0xf]
  %v68 = vld [vmem:[%s1 + $0x3c] sm:$0xf]
  %v69 = vld [vmem:[%s2] sm:$0x1]
  %v71 = vlaneseq
  %v72 = vshrl.u32 %v71, 7
  %v73 = vsub.s32 0, %v72
  %v74 = vrot.slane %v69, %v73
  %v108 = vunpack.c.l.b16 %v21
  %v109 = vunpack.c.l.b16 %v22
  %v110 = vunpack.c.l.b16 %v23
  %v111 = vunpack.c.l.b16 %v24
  %v112 = vunpack.c.l.b16 %v25
  %v113 = vunpack.c.l.b16 %v26
  %v114 = vunpack.c.l.b16 %v27
  %v115 = vunpack.c.l.b16 %v28
  %v116 = vunpack.c.l.b16 %v29
  %v117 = vunpack.c.l.b16 %v30
  %v118 = vunpack.c.l.b16 %v31
  %v119 = vunpack.c.l.b16 %v32
  %v120 = vunpack.c.l.b16 %v33
  %v121 = vunpack.c.l.b16 %v34
  %v122 = vunpack.c.l.b16 %v35
  %v123 = vunpack.c.l.b16 %v36
  %v124 = vunpack.c.l.b16 %v37
  %v125 = vunpack.c.l.b16 %v38
  %v126 = vunpack.c.l.b16 %v39
  %v127 = vunpack.c.l.b16 %v40
  %v128 = vunpack.c.l.b16 %v41
  %v129 = vunpack.c.l.b16 %v42
  %v130 = vunpack.c.l.b16 %v43
  %v131 = vunpack.c.l.b16 %v44
  %v132 = vunpack.c.l.b16 %v45
  %v133 = vunpack.c.l.b16 %v46
  %v134 = vunpack.c.l.b16 %v47
  %v135 = vunpack.c.l.b16 %v48
  %v136 = vunpack.c.l.b16 %v49
  %v137 = vunpack.c.l.b16 %v50
  %v138 = vunpack.c.l.b16 %v51
  %v139 = vunpack.c.l.b16 %v52
  %v140 = vpack.c.b16 %v109, %v108
  %v141 = vpack.c.b16 %v111, %v110
  %v142 = vpack.c.b16 %v113, %v112
  %v143 = vpack.c.b16 %v115, %v114
  %v144 = vpack.c.b16 %v117, %v116
  %v145 = vpack.c.b16 %v119, %v118
  %v146 = vpack.c.b16 %v121, %v120
  %v147 = vpack.c.b16 %v123, %v122
  %v148 = vpack.c.b16 %v125, %v124
  %v149 = vpack.c.b16 %v127, %v126
  %v150 = vpack.c.b16 %v129, %v128
  %v151 = vpack.c.b16 %v131, %v130
  %v152 = vpack.c.b16 %v133, %v132
  %v153 = vpack.c.b16 %v135, %v134
  %v154 = vpack.c.b16 %v137, %v136
  %v155 = vpack.c.b16 %v139, %v138
  %v188 = vunpack.c.l.b16 %v53
  %v189 = vunpack.c.l.b16 %v54
  %v190 = vunpack.c.l.b16 %v55
  %v191 = vunpack.c.l.b16 %v56
  %v192 = vunpack.c.l.b16 %v57
  %v193 = vunpack.c.l.b16 %v58
  %v194 = vunpack.c.l.b16 %v59
  %v195 = vunpack.c.l.b16 %v60
  %v196 = vunpack.c.l.b16 %v61
  %v197 = vunpack.c.l.b16 %v62
  %v198 = vunpack.c.l.b16 %v63
  %v199 = vunpack.c.l.b16 %v64
  %v200 = vunpack.c.l.b16 %v65
  %v201 = vunpack.c.l.b16 %v66
  %v202 = vunpack.c.l.b16 %v67
  %v203 = vunpack.c.l.b16 %v68
  %v204 = vpack.c.b16 %v189, %v188
  %v205 = vpack.c.b16 %v191, %v190
  %v206 = vpack.c.b16 %v193, %v192
  %v207 = vpack.c.b16 %v195, %v194
  %v208 = vpack.c.b16 %v197, %v196
  %v209 = vpack.c.b16 %v199, %v198
  %v210 = vpack.c.b16 %v201, %v200
  %v211 = vpack.c.b16 %v203, %v202
  %220 = vmatprep.subr.bf16.mxu0 0
  %221 = vmatpush1.bf16.msra.mxu0 %v204
  %222 = vmatprep.subr.bf16.mxu0 0
  %223 = vmatpush1.bf16.msra.mxu0 %v205
  %224 = vmatprep.subr.bf16.mxu0 0
  %225 = vmatpush1.bf16.msra.mxu0 %v206
  %226 = vmatprep.subr.bf16.mxu0 0
  %227 = vmatpush1.bf16.msra.mxu0 %v207
  %228 = vmatprep.subr.bf16.mxu0 0
  %229 = vmatpush1.bf16.msra.mxu0 %v208
  %230 = vmatprep.subr.bf16.mxu0 0
  %231 = vmatpush1.bf16.msra.mxu0 %v209
  %232 = vmatprep.subr.bf16.mxu0 0
  %233 = vmatpush1.bf16.msra.mxu0 %v210
  %234 = vmatprep.subr.bf16.mxu0 0
  %235 = vmatpush1.bf16.msra.mxu0 %v211
  %236 = vmatprep.subr.bf16.mxu0 0
  %237 = vmatpush1.bf16.msra.mxu0 0
  %238 = vmatprep.subr.bf16.mxu0 0
  %239 = vmatpush1.bf16.msra.mxu0 0
  %240 = vmatprep.subr.bf16.mxu0 0
  %241 = vmatpush1.bf16.msra.mxu0 0
  %242 = vmatprep.subr.bf16.mxu0 0
  %243 = vmatpush1.bf16.msra.mxu0 0
  %244 = vmatprep.subr.bf16.mxu0 0
  %245 = vmatpush1.bf16.msra.mxu0 0
  %246 = vmatprep.subr.bf16.mxu0 0
  %247 = vmatpush1.bf16.msra.mxu0 0
  %248 = vmatprep.subr.bf16.mxu0 0
  %249 = vmatpush1.bf16.msra.mxu0 0
  %250 = vmatprep.subr.bf16.mxu0 0
  %251 = vmatpush1.bf16.msra.mxu0 0
  %252 = vmatprep.mubr.bf16.mxu0 0
  %253 = vmatmul.mubr.bf16.gmra.mrb[0].mxu0 %v140
  %v254 = vpop.f32.mrb[0].mxu0
  %v255 = vadd.f32 %v74, %v254
  %v256 = vpop.f32.mrb[0].mxu0
  %v257 = vpop.f32.mrb[0].mxu0
  %v258 = vadd.f32 %v74, %v257
  %v259 = vpop.f32.mrb[0].mxu0
  %260 = vmatprep.mubr.bf16.mxu0 0
  %261 = vmatmul.mubr.bf16.gmra.mrb[0].mxu0 %v141
  %v262 = vpop.f32.mrb[0].mxu0
  %v263 = vadd.f32 %v74, %v262
  %v264 = vpop.f32.mrb[0].mxu0
  %v265 = vpop.f32.mrb[0].mxu0
  %v266 = vadd.f32 %v74, %v265
  %v267 = vpop.f32.mrb[0].mxu0
  %268 = vmatprep.mubr.bf16.mxu0 0
  %269 = vmatmul.mubr.bf16.gmra.mrb[0].mxu0 %v142
  %v270 = vpop.f32.mrb[0].mxu0
  %v271 = vadd.f32 %v74, %v270
  %v272 = vpop.f32.mrb[0].mxu0
  %v273 = vpop.f32.mrb[0].mxu0
  %v274 = vadd.f32 %v74, %v273
  %v275 = vpop.f32.mrb[0].mxu0
  %276 = vmatprep.mubr.bf16.mxu0 0
  %277 = vmatmul.mubr.bf16.gmra.mrb[0].mxu0 %v143
  %v278 = vpop.f32.mrb[0].mxu0
  %v279 = vadd.f32 %v74, %v278
  %v280 = vpop.f32.mrb[0].mxu0
  %v281 = vpop.f32.mrb[0].mxu0
  %v282 = vadd.f32 %v74, %v281
  %v283 = vpop.f32.mrb[0].mxu0
  %284 = vmatprep.mubr.bf16.mxu0 0
  %285 = vmatmul.mubr.bf16.gmra.mrb[0].mxu0 %v144
  %v286 = vpop.f32.mrb[0].mxu0
  %v287 = vadd.f32 %v74, %v286
  %v288 = vpop.f32.mrb[0].mxu0
  %v289 = vpop.f32.mrb[0].mxu0
  %v290 = vadd.f32 %v74, %v289
  %v291 = vpop.f32.mrb[0].mxu0
  %292 = vmatprep.mubr.bf16.mxu0 0
  %293 = vmatmul.mubr.bf16.gmra.mrb[0].mxu0 %v145
  %v294 = vpop.f32.mrb[0].mxu0
  %v295 = vadd.f32 %v74, %v294
  %v296 = vpop.f32.mrb[0].mxu0
  %v297 = vpop.f32.mrb[0].mxu0
  %v298 = vadd.f32 %v74, %v297
  %v299 = vpop.f32.mrb[0].mxu0
  %300 = vmatprep.mubr.bf16.mxu0 0
  %301 = vmatmul.mubr.bf16.gmra.mrb[0].mxu0 %v146
  %v302 = vpop.f32.mrb[0].mxu0
  %v303 = vadd.f32 %v74, %v302
  %v304 = vpop.f32.mrb[0].mxu0
  %v305 = vpop.f32.mrb[0].mxu0
  %v306 = vadd.f32 %v74, %v305
  %v307 = vpop.f32.mrb[0].mxu0
  %308 = vmatprep.mubr.bf16.mxu0 0
  %309 = vmatmul.mubr.bf16.gmra.mrb[0].mxu0 %v147
  %v310 = vpop.f32.mrb[0].mxu0
  %v311 = vadd.f32 %v74, %v310
  %v312 = vpop.f32.mrb[0].mxu0
  %v313 = vpop.f32.mrb[0].mxu0
  %v314 = vadd.f32 %v74, %v313
  %v315 = vpop.f32.mrb[0].mxu0
  %316 = vmatprep.mubr.bf16.mxu0 0
  %317 = vmatmul.mubr.bf16.gmra.mrb[0].mxu0 %v148
  %v318 = vpop.f32.mrb[0].mxu0
  %v319 = vadd.f32 %v74, %v318
  %v320 = vpop.f32.mrb[0].mxu0
  %v321 = vpop.f32.mrb[0].mxu0
  %v322 = vadd.f32 %v74, %v321
  %v323 = vpop.f32.mrb[0].mxu0
  %324 = vmatprep.mubr.bf16.mxu0 0
  %325 = vmatmul.mubr.bf16.gmra.mrb[0].mxu0 %v149
  %v326 = vpop.f32.mrb[0].mxu0
  %v327 = vadd.f32 %v74, %v326
  %v328 = vpop.f32.mrb[0].mxu0
  %v329 = vpop.f32.mrb[0].mxu0
  %v330 = vadd.f32 %v74, %v329
  %v331 = vpop.f32.mrb[0].mxu0
  %332 = vmatprep.mubr.bf16.mxu0 0
  %333 = vmatmul.mubr.bf16.gmra.mrb[0].mxu0 %v150
  %v334 = vpop.f32.mrb[0].mxu0
  %v335 = vadd.f32 %v74, %v334
  %v336 = vpop.f32.mrb[0].mxu0
  %v337 = vpop.f32.mrb[0].mxu0
  %v338 = vadd.f32 %v74, %v337
  %v339 = vpop.f32.mrb[0].mxu0
  %340 = vmatprep.mubr.bf16.mxu0 0
  %341 = vmatmul.mubr.bf16.gmra.mrb[0].mxu0 %v151
  %v342 = vpop.f32.mrb[0].mxu0
  %v343 = vadd.f32 %v74, %v342
  %v344 = vpop.f32.mrb[0].mxu0
  %v345 = vpop.f32.mrb[0].mxu0
  %v346 = vadd.f32 %v74, %v345
  %v347 = vpop.f32.mrb[0].mxu0
  %348 = vmatprep.mubr.bf16.mxu0 0
  %349 = vmatmul.mubr.bf16.gmra.mrb[0].mxu0 %v152
  %v350 = vpop.f32.mrb[0].mxu0
  %v351 = vadd.f32 %v74, %v350
  %v352 = vpop.f32.mrb[0].mxu0
  %v353 = vpop.f32.mrb[0].mxu0
  %v354 = vadd.f32 %v74, %v353
  %v355 = vpop.f32.mrb[0].mxu0
  %356 = vmatprep.mubr.bf16.mxu0 0
  %357 = vmatmul.mubr.bf16.gmra.mrb[0].mxu0 %v153
  %v358 = vpop.f32.mrb[0].mxu0
  %v359 = vadd.f32 %v74, %v358
  %v360 = vpop.f32.mrb[0].mxu0
  %v361 = vpop.f32.mrb[0].mxu0
  %v362 = vadd.f32 %v74, %v361
  %v363 = vpop.f32.mrb[0].mxu0
  %364 = vmatprep.mubr.bf16.mxu0 0
  %365 = vmatmul.mubr.bf16.gmra.mrb[0].mxu0 %v154
  %v366 = vpop.f32.mrb[0].mxu0
  %v367 = vadd.f32 %v74, %v366
  %v368 = vpop.f32.mrb[0].mxu0
  %v369 = vpop.f32.mrb[0].mxu0
  %v370 = vadd.f32 %v74, %v369
  %v371 = vpop.f32.mrb[0].mxu0
  %372 = vmatprep.mubr.bf16.mxu0 0
  %373 = vmatmul.mubr.bf16.gmra.mrb[0].mxu0 %v155
  %v374 = vpop.f32.mrb[0].mxu0
  %v375 = vadd.f32 %v74, %v374
  %v376 = vpop.f32.mrb[0].mxu0
  %v377 = vpop.f32.mrb[0].mxu0
  %v378 = vadd.f32 %v74, %v377
  %v379 = vpop.f32.mrb[0].mxu0
  %380 = vdwg.mxu0
  %v381 = vmax.f32 %v255, 0.0
  %v382 = vmax.f32 %v258, 0.0
  %v383 = vmax.f32 %v263, 0.0
  %v384 = vmax.f32 %v266, 0.0
  %v385 = vmax.f32 %v271, 0.0
  %v386 = vmax.f32 %v274, 0.0
  %v387 = vmax.f32 %v279, 0.0
  %v388 = vmax.f32 %v282, 0.0
  %v389 = vmax.f32 %v287, 0.0
  %v390 = vmax.f32 %v290, 0.0
  %v391 = vmax.f32 %v295, 0.0
  %v392 = vmax.f32 %v298, 0.0
  %v393 = vmax.f32 %v303, 0.0
  %v394 = vmax.f32 %v306, 0.0
  %v395 = vmax.f32 %v311, 0.0
  %v396 = vmax.f32 %v314, 0.0
  %v397 = vmax.f32 %v319, 0.0
  %v398 = vmax.f32 %v322, 0.0
  %v399 = vmax.f32 %v327, 0.0
  %v400 = vmax.f32 %v330, 0.0
  %v401 = vmax.f32 %v335, 0.0
  %v402 = vmax.f32 %v338, 0.0
  %v403 = vmax.f32 %v343, 0.0
  %v404 = vmax.f32 %v346, 0.0
  %v405 = vmax.f32 %v351, 0.0
  %v406 = vmax.f32 %v354, 0.0
  %v407 = vmax.f32 %v359, 0.0
  %v408 = vmax.f32 %v362, 0.0
  %v409 = vmax.f32 %v367, 0.0
  %v410 = vmax.f32 %v370, 0.0
  %v411 = vmax.f32 %v375, 0.0
  %v412 = vmax.f32 %v378, 0.0
  %v413 = vpack.c.bf16 %v382, %v381
  %v414 = vpack.c.bf16 %v384, %v383
  %v415 = vpack.c.bf16 %v386, %v385
  %v416 = vpack.c.bf16 %v388, %v387
  %v417 = vpack.c.bf16 %v390, %v389
  %v418 = vpack.c.bf16 %v392, %v391
  %v419 = vpack.c.bf16 %v394, %v393
  %v420 = vpack.c.bf16 %v396, %v395
  %v421 = vpack.c.bf16 %v398, %v397
  %v422 = vpack.c.bf16 %v400, %v399
  %v423 = vpack.c.bf16 %v402, %v401
  %v424 = vpack.c.bf16 %v404, %v403
  %v425 = vpack.c.bf16 %v406, %v405
  %v426 = vpack.c.bf16 %v408, %v407
  %v427 = vpack.c.bf16 %v410, %v409
  %v428 = vpack.c.bf16 %v412, %v411
  %v429 = vld [vmem:[%s3] sm:$0xf]
  %v430 = vld [vmem:[%s3 + $0x4] sm:$0xf]
  %v431 = vld [vmem:[%s3 + $0x8] sm:$0xf]
  %v432 = vld [vmem:[%s3 + $0xc] sm:$0xf]
  %v433 = vld [vmem:[%s3 + $0x10] sm:$0xf]
  %v434 = vld [vmem:[%s3 + $0x14] sm:$0xf]
  %v435 = vld [vmem:[%s3 + $0x18] sm:$0xf]
  %v436 = vld [vmem:[%s3 + $0x1c] sm:$0xf]
  %v437 = vld [vmem:[%s3 + $0x20] sm:$0xf]
  %v438 = vld [vmem:[%s3 + $0x24] sm:$0xf]
  %v439 = vld [vmem:[%s3 + $0x28] sm:$0xf]
  %v440 = vld [vmem:[%s3 + $0x2c] sm:$0xf]
  %v441 = vld [vmem:[%s3 + $0x30] sm:$0xf]
  %v442 = vld [vmem:[%s3 + $0x34] sm:$0xf]
  %v443 = vld [vmem:[%s3 + $0x38] sm:$0xf]
  %v444 = vld [vmem:[%s3 + $0x3c] sm:$0xf]
  %v445 = vld [vmem:[%s4] sm:$0x1]
  %v447 = vlaneseq
  %v448 = vshrl.u32 %v447, 7
  %v449 = vsub.s32 0, %v448
  %v450 = vrot.slane %v445, %v449
  %v468 = vunpack.c.l.b16 %v429
  %v469 = vunpack.c.l.b16 %v430
  %v470 = vunpack.c.l.b16 %v431
  %v471 = vunpack.c.l.b16 %v432
  %v472 = vunpack.c.l.b16 %v433
  %v473 = vunpack.c.l.b16 %v434
  %v474 = vunpack.c.l.b16 %v435
  %v475 = vunpack.c.l.b16 %v436
  %v476 = vunpack.c.l.b16 %v437
  %v477 = vunpack.c.l.b16 %v438
  %v478 = vunpack.c.l.b16 %v439
  %v479 = vunpack.c.l.b16 %v440
  %v480 = vunpack.c.l.b16 %v441
  %v481 = vunpack.c.l.b16 %v442
  %v482 = vunpack.c.l.b16 %v443
  %v483 = vunpack.c.l.b16 %v444
  %v484 = vpack.c.b16 %v469, %v468
  %v485 = vpack.c.b16 %v471, %v470
  %v486 = vpack.c.b16 %v473, %v472
  %v487 = vpack.c.b16 %v475, %v474
  %v488 = vpack.c.b16 %v477, %v476
  %v489 = vpack.c.b16 %v479, %v478
  %v490 = vpack.c.b16 %v481, %v480
  %v491 = vpack.c.b16 %v483, %v482
  %500 = vmatprep.subr.bf16.mxu0 0
  %501 = vmatpush1.bf16.msra.mxu0 %v484
  %502 = vmatprep.subr.bf16.mxu0 0
  %503 = vmatpush1.bf16.msra.mxu0 %v485
  %504 = vmatprep.subr.bf16.mxu0 0
  %505 = vmatpush1.bf16.msra.mxu0 %v486
  %506 = vmatprep.subr.bf16.mxu0 0
  %507 = vmatpush1.bf16.msra.mxu0 %v487
  %508 = vmatprep.subr.bf16.mxu0 0
  %509 = vmatpush1.bf16.msra.mxu0 %v488
  %510 = vmatprep.subr.bf16.mxu0 0
  %511 = vmatpush1.bf16.msra.mxu0 %v489
  %512 = vmatprep.subr.bf16.mxu0 0
  %513 = vmatpush1.bf16.msra.mxu0 %v490
  %514 = vmatprep.subr.bf16.mxu0 0
  %515 = vmatpush1.bf16.msra.mxu0 %v491
  %516 = vmatprep.subr.bf16.mxu0 0
  %517 = vmatpush1.bf16.msra.mxu0 0
  %518 = vmatprep.subr.bf16.mxu0 0
  %519 = vmatpush1.bf16.msra.mxu0 0
  %520 = vmatprep.subr.bf16.mxu0 0
  %521 = vmatpush1.bf16.msra.mxu0 0
  %522 = vmatprep.subr.bf16.mxu0 0
  %523 = vmatpush1.bf16.msra.mxu0 0
  %524 = vmatprep.subr.bf16.mxu0 0
  %525 = vmatpush1.bf16.msra.mxu0 0
  %526 = vmatprep.subr.bf16.mxu0 0
  %527 = vmatpush1.bf16.msra.mxu0 0
  %528 = vmatprep.subr.bf16.mxu0 0
  %529 = vmatpush1.bf16.msra.mxu0 0
  %530 = vmatprep.subr.bf16.mxu0 0
  %531 = vmatpush1.bf16.msra.mxu0 0
  %532 = vmatprep.mubr.bf16.mxu0 0
  %533 = vmatmul.mubr.bf16.gmra.mrb[0].mxu0 %v413
  %v534 = vpop.f32.mrb[0].mxu0
  %v535 = vadd.f32 %v450, %v534
  %v536 = vpop.f32.mrb[0].mxu0
  %v537 = vpop.f32.mrb[0].mxu0
  %v538 = vadd.f32 %v450, %v537
  %v539 = vpop.f32.mrb[0].mxu0
  %540 = vmatprep.mubr.bf16.mxu0 0
  %541 = vmatmul.mubr.bf16.gmra.mrb[0].mxu0 %v414
  %v542 = vpop.f32.mrb[0].mxu0
  %v543 = vadd.f32 %v450, %v542
  %v544 = vpop.f32.mrb[0].mxu0
  %v545 = vpop.f32.mrb[0].mxu0
  %v546 = vadd.f32 %v450, %v545
  %v547 = vpop.f32.mrb[0].mxu0
  %548 = vmatprep.mubr.bf16.mxu0 0
  %549 = vmatmul.mubr.bf16.gmra.mrb[0].mxu0 %v415
  %v550 = vpop.f32.mrb[0].mxu0
  %v551 = vadd.f32 %v450, %v550
  %v552 = vpop.f32.mrb[0].mxu0
  %v553 = vpop.f32.mrb[0].mxu0
  %v554 = vadd.f32 %v450, %v553
  %v555 = vpop.f32.mrb[0].mxu0
  %556 = vmatprep.mubr.bf16.mxu0 0
  %557 = vmatmul.mubr.bf16.gmra.mrb[0].mxu0 %v416
  %v558 = vpop.f32.mrb[0].mxu0
  %v559 = vadd.f32 %v450, %v558
  %v560 = vpop.f32.mrb[0].mxu0
  %v561 = vpop.f32.mrb[0].mxu0
  %v562 = vadd.f32 %v450, %v561
  %v563 = vpop.f32.mrb[0].mxu0
  %564 = vmatprep.mubr.bf16.mxu0 0
  %565 = vmatmul.mubr.bf16.gmra.mrb[0].mxu0 %v417
  %v566 = vpop.f32.mrb[0].mxu0
  %v567 = vadd.f32 %v450, %v566
  %v568 = vpop.f32.mrb[0].mxu0
  %v569 = vpop.f32.mrb[0].mxu0
  %v570 = vadd.f32 %v450, %v569
  %v571 = vpop.f32.mrb[0].mxu0
  %572 = vmatprep.mubr.bf16.mxu0 0
  %573 = vmatmul.mubr.bf16.gmra.mrb[0].mxu0 %v418
  %v574 = vpop.f32.mrb[0].mxu0
  %v575 = vadd.f32 %v450, %v574
  %v576 = vpop.f32.mrb[0].mxu0
  %v577 = vpop.f32.mrb[0].mxu0
  %v578 = vadd.f32 %v450, %v577
  %v579 = vpop.f32.mrb[0].mxu0
  %580 = vmatprep.mubr.bf16.mxu0 0
  %581 = vmatmul.mubr.bf16.gmra.mrb[0].mxu0 %v419
  %v582 = vpop.f32.mrb[0].mxu0
  %v583 = vadd.f32 %v450, %v582
  %v584 = vpop.f32.mrb[0].mxu0
  %v585 = vpop.f32.mrb[0].mxu0
  %v586 = vadd.f32 %v450, %v585
  %v587 = vpop.f32.mrb[0].mxu0
  %588 = vmatprep.mubr.bf16.mxu0 0
  %589 = vmatmul.mubr.bf16.gmra.mrb[0].mxu0 %v420
  %v590 = vpop.f32.mrb[0].mxu0
  %v591 = vadd.f32 %v450, %v590
  %v592 = vpop.f32.mrb[0].mxu0
  %v593 = vpop.f32.mrb[0].mxu0
  %v594 = vadd.f32 %v450, %v593
  %v595 = vpop.f32.mrb[0].mxu0
  %596 = vmatprep.mubr.bf16.mxu0 0
  %597 = vmatmul.mubr.bf16.gmra.mrb[0].mxu0 %v421
  %v598 = vpop.f32.mrb[0].mxu0
  %v599 = vadd.f32 %v450, %v598
  %v600 = vpop.f32.mrb[0].mxu0
  %v601 = vpop.f32.mrb[0].mxu0
  %v602 = vadd.f32 %v450, %v601
  %v603 = vpop.f32.mrb[0].mxu0
  %604 = vmatprep.mubr.bf16.mxu0 0
  %605 = vmatmul.mubr.bf16.gmra.mrb[0].mxu0 %v422
  %v606 = vpop.f32.mrb[0].mxu0
  %v607 = vadd.f32 %v450, %v606
  %v608 = vpop.f32.mrb[0].mxu0
  %v609 = vpop.f32.mrb[0].mxu0
  %v610 = vadd.f32 %v450, %v609
  %v611 = vpop.f32.mrb[0].mxu0
  %612 = vmatprep.mubr.bf16.mxu0 0
  %613 = vmatmul.mubr.bf16.gmra.mrb[0].mxu0 %v423
  %v614 = vpop.f32.mrb[0].mxu0
  %v615 = vadd.f32 %v450, %v614
  %v616 = vpop.f32.mrb[0].mxu0
  %v617 = vpop.f32.mrb[0].mxu0
  %v618 = vadd.f32 %v450, %v617
  %v619 = vpop.f32.mrb[0].mxu0
  %620 = vmatprep.mubr.bf16.mxu0 0
  %621 = vmatmul.mubr.bf16.gmra.mrb[0].mxu0 %v424
  %v622 = vpop.f32.mrb[0].mxu0
  %v623 = vadd.f32 %v450, %v622
  %v624 = vpop.f32.mrb[0].mxu0
  %v625 = vpop.f32.mrb[0].mxu0
  %v626 = vadd.f32 %v450, %v625
  %v627 = vpop.f32.mrb[0].mxu0
  %628 = vmatprep.mubr.bf16.mxu0 0
  %629 = vmatmul.mubr.bf16.gmra.mrb[0].mxu0 %v425
  %v630 = vpop.f32.mrb[0].mxu0
  %v631 = vadd.f32 %v450, %v630
  %v632 = vpop.f32.mrb[0].mxu0
  %v633 = vpop.f32.mrb[0].mxu0
  %v634 = vadd.f32 %v450, %v633
  %v635 = vpop.f32.mrb[0].mxu0
  %636 = vmatprep.mubr.bf16.mxu0 0
  %637 = vmatmul.mubr.bf16.gmra.mrb[0].mxu0 %v426
  %v638 = vpop.f32.mrb[0].mxu0
  %v639 = vadd.f32 %v450, %v638
  %v640 = vpop.f32.mrb[0].mxu0
  %v641 = vpop.f32.mrb[0].mxu0
  %v642 = vadd.f32 %v450, %v641
  %v643 = vpop.f32.mrb[0].mxu0
  %644 = vmatprep.mubr.bf16.mxu0 0
  %645 = vmatmul.mubr.bf16.gmra.mrb[0].mxu0 %v427
  %v646 = vpop.f32.mrb[0].mxu0
  %v647 = vadd.f32 %v450, %v646
  %v648 = vpop.f32.mrb[0].mxu0
  %v649 = vpop.f32.mrb[0].mxu0
  %v650 = vadd.f32 %v450, %v649
  %v651 = vpop.f32.mrb[0].mxu0
  %652 = vmatprep.mubr.bf16.mxu0 0
  %653 = vmatmul.mubr.bf16.gmra.mrb[0].mxu0 %v428
  %v654 = vpop.f32.mrb[0].mxu0
  %v655 = vadd.f32 %v450, %v654
  %v656 = vpop.f32.mrb[0].mxu0
  %v657 = vpop.f32.mrb[0].mxu0
  %v658 = vadd.f32 %v450, %v657
  %v659 = vpop.f32.mrb[0].mxu0
  %660 = vdwg.mxu0
  %v661 = vpack.c.bf16 %v538, %v535
  %v662 = vpack.c.bf16 %v546, %v543
  %v663 = vpack.c.bf16 %v554, %v551
  %v664 = vpack.c.bf16 %v562, %v559
  %v665 = vpack.c.bf16 %v570, %v567
  %v666 = vpack.c.bf16 %v578, %v575
  %v667 = vpack.c.bf16 %v586, %v583
  %v668 = vpack.c.bf16 %v594, %v591
  %v669 = vpack.c.bf16 %v602, %v599
  %v670 = vpack.c.bf16 %v610, %v607
  %v671 = vpack.c.bf16 %v618, %v615
  %v672 = vpack.c.bf16 %v626, %v623
  %v673 = vpack.c.bf16 %v634, %v631
  %v674 = vpack.c.bf16 %v642, %v639
  %v675 = vpack.c.bf16 %v650, %v647
  %v676 = vpack.c.bf16 %v658, %v655
  %v693 = vunpack.c.l.b16 %v661
  %v694 = vunpack.c.h.b16 %v661
  %v695 = vunpack.c.l.b16 %v662
  %v696 = vunpack.c.h.b16 %v662
  %v697 = vunpack.c.l.b16 %v663
  %v698 = vunpack.c.h.b16 %v663
  %v699 = vunpack.c.l.b16 %v664
  %v700 = vunpack.c.h.b16 %v664
  %v701 = vunpack.c.l.b16 %v665
  %v702 = vunpack.c.h.b16 %v665
  %v703 = vunpack.c.l.b16 %v666
  %v704 = vunpack.c.h.b16 %v666
  %v705 = vunpack.c.l.b16 %v667
  %v706 = vunpack.c.h.b16 %v667
  %v707 = vunpack.c.l.b16 %v668
  %v708 = vunpack.c.h.b16 %v668
  %v709 = vunpack.c.l.b16 %v669
  %v710 = vunpack.c.h.b16 %v669
  %v711 = vunpack.c.l.b16 %v670
  %v712 = vunpack.c.h.b16 %v670
  %v713 = vunpack.c.l.b16 %v671
  %v714 = vunpack.c.h.b16 %v671
  %v715 = vunpack.c.l.b16 %v672
  %v716 = vunpack.c.h.b16 %v672
  %v717 = vunpack.c.l.b16 %v673
  %v718 = vunpack.c.h.b16 %v673
  %v719 = vunpack.c.l.b16 %v674
  %v720 = vunpack.c.h.b16 %v674
  %v721 = vunpack.c.l.b16 %v675
  %v722 = vunpack.c.h.b16 %v675
  %v723 = vunpack.c.l.b16 %v676
  %v724 = vunpack.c.h.b16 %v676
  %v725 = vpack.c.b16 %v693, %v693
  %v726 = vpack.c.b16 %v694, %v694
  %v727 = vpack.c.b16 %v695, %v695
  %v728 = vpack.c.b16 %v696, %v696
  %v729 = vpack.c.b16 %v697, %v697
  %v730 = vpack.c.b16 %v698, %v698
  %v731 = vpack.c.b16 %v699, %v699
  %v732 = vpack.c.b16 %v700, %v700
  %v733 = vpack.c.b16 %v701, %v701
  %v734 = vpack.c.b16 %v702, %v702
  %v735 = vpack.c.b16 %v703, %v703
  %v736 = vpack.c.b16 %v704, %v704
  %v737 = vpack.c.b16 %v705, %v705
  %v738 = vpack.c.b16 %v706, %v706
  %v739 = vpack.c.b16 %v707, %v707
  %v740 = vpack.c.b16 %v708, %v708
  %v741 = vpack.c.b16 %v709, %v709
  %v742 = vpack.c.b16 %v710, %v710
  %v743 = vpack.c.b16 %v711, %v711
  %v744 = vpack.c.b16 %v712, %v712
  %v745 = vpack.c.b16 %v713, %v713
  %v746 = vpack.c.b16 %v714, %v714
  %v747 = vpack.c.b16 %v715, %v715
  %v748 = vpack.c.b16 %v716, %v716
  %v749 = vpack.c.b16 %v717, %v717
  %v750 = vpack.c.b16 %v718, %v718
  %v751 = vpack.c.b16 %v719, %v719
  %v752 = vpack.c.b16 %v720, %v720
  %v753 = vpack.c.b16 %v721, %v721
  %v754 = vpack.c.b16 %v722, %v722
  %v755 = vpack.c.b16 %v723, %v723
  %v756 = vpack.c.b16 %v724, %v724
  %789 = vst [vmem:[%s5] sm:$0xf] %v725
  %790 = vst [vmem:[%s5 + $0x4] sm:$0xf] %v726
  %791 = vst [vmem:[%s5 + $0x8] sm:$0xf] %v727
  %792 = vst [vmem:[%s5 + $0xc] sm:$0xf] %v728
  %793 = vst [vmem:[%s5 + $0x10] sm:$0xf] %v729
  %794 = vst [vmem:[%s5 + $0x14] sm:$0xf] %v730
  %795 = vst [vmem:[%s5 + $0x18] sm:$0xf] %v731
  %796 = vst [vmem:[%s5 + $0x1c] sm:$0xf] %v732
  %797 = vst [vmem:[%s5 + $0x20] sm:$0xf] %v733
  %798 = vst [vmem:[%s5 + $0x24] sm:$0xf] %v734
  %799 = vst [vmem:[%s5 + $0x28] sm:$0xf] %v735
  %800 = vst [vmem:[%s5 + $0x2c] sm:$0xf] %v736
  %801 = vst [vmem:[%s5 + $0x30] sm:$0xf] %v737
  %802 = vst [vmem:[%s5 + $0x34] sm:$0xf] %v738
  %803 = vst [vmem:[%s5 + $0x38] sm:$0xf] %v739
  %804 = vst [vmem:[%s5 + $0x3c] sm:$0xf] %v740
  %805 = vst [vmem:[%s5 + $0x40] sm:$0xf] %v741
  %806 = vst [vmem:[%s5 + $0x44] sm:$0xf] %v742
  %807 = vst [vmem:[%s5 + $0x48] sm:$0xf] %v743
  %808 = vst [vmem:[%s5 + $0x4c] sm:$0xf] %v744
  %809 = vst [vmem:[%s5 + $0x50] sm:$0xf] %v745
  %810 = vst [vmem:[%s5 + $0x54] sm:$0xf] %v746
  %811 = vst [vmem:[%s5 + $0x58] sm:$0xf] %v747
  %812 = vst [vmem:[%s5 + $0x5c] sm:$0xf] %v748
  %813 = vst [vmem:[%s5 + $0x60] sm:$0xf] %v749
  %814 = vst [vmem:[%s5 + $0x64] sm:$0xf] %v750
  %815 = vst [vmem:[%s5 + $0x68] sm:$0xf] %v751
  %816 = vst [vmem:[%s5 + $0x6c] sm:$0xf] %v752
  %817 = vst [vmem:[%s5 + $0x70] sm:$0xf] %v753
  %818 = vst [vmem:[%s5 + $0x74] sm:$0xf] %v754
  %819 = vst [vmem:[%s5 + $0x78] sm:$0xf] %v755
  %820 = vst [vmem:[%s5 + $0x7c] sm:$0xf] %v756
  // Predicated region
  $region22: #{gnn_forward.2} parent=0 // pred_check
    _
  $region23: #{gnn_forward.2} parent=0 // pred_check_branch
    %822 = sbr.rel (0) target = $region25
  $region24: #{gnn_forward.2} parent=0 // pred_region
    _
  $region25: #{gnn_forward.2} parent=0 // pred_fallthru
    _
  // Predicated region
  $region26: #{gnn_forward.2} parent=0 // pred_check
    _
  $region27: #{gnn_forward.2} parent=0 // pred_check_branch
    %824 = sbr.rel (0) target = $region29
  $region28: #{gnn_forward.2} parent=0 // pred_region
    _
  $region29: #{gnn_forward.2} parent=0 // pred_fallthru
    _

// kernel: gnn_forward.3
$region0: #{gnn_forward.3}
  #allocation0 [shape = 'u32[]', space=smem, size = 0x4, offset = 0x4, fixed_abs, tag = 'smem constant byte address 0x4 - core index']
  #allocation1 [shape = 'u32[144,128]{1,0:T(1,128)}', space=vmem, size = 0x12000, scoped, tag = 'internal scratch']
  #allocation2 [shape = 'bf16[2,256,128]{2,1,0:T(16,128)(2,1)}', space=vmem, size = 0x20000, scoped, tag = 'scratch operand']
  %s0 = inlined_call_operand.vmem [shape: bf16[256,256], index: 0, kind: input, shape index: {}]
  %s1 = inlined_call_operand.vmem [shape: bf16[256,128], index: 1, kind: input, shape index: {}]
  %s2 = inlined_call_operand.vmem [shape: f32[256,128], index: 2, kind: output, shape index: {}]
  %s3 = sld [smem:[#allocation0]]
  $region53: #{gnn_forward.3} parent=0
    _
  %s5 = ssub.s32 1, %s3
  %s6 = scalar_select 0, %s5, %s3
  loop: start=0, step=1, limit=13
  $region2: #{gnn_forward.3} parent=0 // loop_pre_header
    _
  $region3: #{gnn_forward.3} parent=0 // loop_header
    %s8 = sphi 0, %s12
    %p9 = scmp.ge.s32.totalorder %s8, 13
    %s15 = sphi 0, %s27
    %s16 = sphi 0, %s23
    %s17 = sphi 0, %s15
    %s18 = sphi 0, %s16
    %s19 = sphi 0, %s17
    %s20 = sphi 0, %s18
    %s28 = sphi 0, %s28
    %s30 = sphi 0, %s28
    %s31 = sphi 0, %s30
    %s45 = sphi 0, %s31
    %s51 = sphi 0, %s53
    %s54 = sphi 0, %s51
    %s55 = sphi 0, %s54
    %s71 = sphi 0, %s55
    %s77 = sphi 0, %s79
    %s80 = sphi 0, %s77
    %s81 = sphi 0, %s80
    %s97 = sphi 0, %s81
  $region4: #{gnn_forward.3} parent=0 // loop_header_branch
    %11 = sbr.rel (%p9) target = $region8
  $region5: #{gnn_forward.3} parent=0 // loop_body
    %s13 = ssub.s32 %s8, 1
    %s14 = ssub.s32 %s8, 2
    %s21 = sadd.s32 1, %s16
    %p22 = scmp.ge.s32.totalorder %s21, 1
    %s23 = scalar_select %p22, 0, %s21
    %s24 = sadd.s32 1, %s15
    %s25 = scalar_select %p22, %s24, %s15
    %p26 = scmp.ge.s32.totalorder %s25, 11
    %s27 = scalar_select %p26, 0, %s25
    %s29 = sadd.s32 %s28, 1
    %p32 = scmp.eq.s32.totalorder %s8, 10
    %p33 = scmp.ne.s32.totalorder %s28, %s30
    %p34 = scmp.eq.s32.totalorder %s8, 0
    %p35 = por %p33, %p34
    %p36 = scmp.ne.s32.totalorder %s28, %s30
    %p37 = scmp.eq.s32.totalorder %s13, 10
    %p38 = por %p36, %p37
    %p39 = scmp.ne.s32.totalorder %s30, %s31
    %p40 = scmp.eq.s32.totalorder %s13, 0
    %p41 = por %p39, %p40
    %p42 = scmp.ne.s32.totalorder %s30, %s31
    %p43 = scmp.eq.s32.totalorder %s14, 10
    %p44 = por %p42, %p43
    %p46 = scmp.ne.s32.totalorder %s31, %s45
    %p47 = scmp.eq.s32.totalorder %s14, 0
    %p48 = por %p46, %p47
    %s49 = ssub.s32 %s16, %s23
    %p50 = scmp.eq.s32.totalorder %s49, 0
    %s52 = sadd.s32 %s51, 1
    %s53 = scalar_select %p50, %s51, %s52
    %p56 = pneg %p50
    %p57 = scmp.eq.s32.totalorder %s8, 10
    %p58 = por %p56, %p57
    %p59 = scmp.ne.s32.totalorder %s51, %s54
    %p60 = scmp.eq.s32.totalorder %s8, 0
    %p61 = por %p59, %p60
    %p62 = scmp.ne.s32.totalorder %s51, %s54
    %p63 = scmp.eq.s32.totalorder %s13, 10
    %p64 = por %p62, %p63
    %p65 = scmp.ne.s32.totalorder %s54, %s55
    %p66 = scmp.eq.s32.totalorder %s13, 0
    %p67 = por %p65, %p66
    %p68 = scmp.ne.s32.totalorder %s54, %s55
    %p69 = scmp.eq.s32.totalorder %s14, 10
    %p70 = por %p68, %p69
    %p72 = scmp.ne.s32.totalorder %s55, %s71
    %p73 = scmp.eq.s32.totalorder %s14, 0
    %p74 = por %p72, %p73
    %s75 = ssub.s32 %s16, %s23
    %p76 = scmp.eq.s32.totalorder %s75, 0
    %s78 = sadd.s32 %s77, 1
    %s79 = scalar_select %p76, %s77, %s78
    %p82 = pneg %p76
    %p83 = scmp.eq.s32.totalorder %s8, 10
    %p84 = por %p82, %p83
    %p85 = scmp.ne.s32.totalorder %s77, %s80
    %p86 = scmp.eq.s32.totalorder %s8, 0
    %p87 = por %p85, %p86
    %p88 = scmp.ne.s32.totalorder %s77, %s80
    %p89 = scmp.eq.s32.totalorder %s13, 10
    %p90 = por %p88, %p89
    %p91 = scmp.ne.s32.totalorder %s80, %s81
    %p92 = scmp.eq.s32.totalorder %s13, 0
    %p93 = por %p91, %p92
    %p94 = scmp.ne.s32.totalorder %s80, %s81
    %p95 = scmp.eq.s32.totalorder %s14, 10
    %p96 = por %p94, %p95
    %p98 = scmp.ne.s32.totalorder %s81, %s97
    %p99 = scmp.eq.s32.totalorder %s14, 0
    %p100 = por %p98, %p99
    %p101 = scmp.le.s32.totalorder 1, %s8
    %p102 = scmp.lt.s32.totalorder %s8, 12
    %p103 = pnand %p101, %p102
    %p104 = pneg %p103
    // Predicated region
    $region9: #{gnn_forward.3} parent=5 // pred_check
      _
    $region10: #{gnn_forward.3} parent=5 // pred_check_branch
      %106 = sbr.rel (%p103) target = $region12
    $region11: #{gnn_forward.3} parent=5 // pred_region
      %s107 = ssub.s32 %s8, 1
      // Predicated region
      $region13: #{gnn_forward.3} parent=11 // pred_check
        %p108 = pneg %p41
      $region14: #{gnn_forward.3} parent=11 // pred_check_branch
        %110 = sbr.rel (%p108) target = $region16
      $region15: #{gnn_forward.3} parent=11 // pred_region
        _
      $region16: #{gnn_forward.3} parent=11 // pred_fallthru
        _
      // Predicated region
      $region17: #{gnn_forward.3} parent=11 // pred_check
        %p111 = pneg %p67
      $region18: #{gnn_forward.3} parent=11 // pred_check_branch
        %113 = sbr.rel (%p111) target = $region20
      $region19: #{gnn_forward.3} parent=11 // pred_region
        %s114 = smul.u32 32, %s18
        %p115 = scmp.lt.s32.totalorder %s114, 31
        %s116 = scalar_select %p115, %s114, 31
        %s117 = smul.addr %s116, 4
        %s118 = scalar_lea.vmem %s1, %s117
        %s119 = smul.u32 32, %s18
      $region20: #{gnn_forward.3} parent=11 // pred_fallthru
        _
    $region12: #{gnn_forward.3} parent=5 // pred_fallthru
      _
    %p120 = scmp.lt.s32.totalorder %s8, 11
    // Predicated region
    $region21: #{gnn_forward.3} parent=5 // pred_check
      %p121 = pneg %p120
    $region22: #{gnn_forward.3} parent=5 // pred_check_branch
      %123 = sbr.rel (%p121) target = $region24
    $region23: #{gnn_forward.3} parent=5 // pred_region
      _
    $region24: #{gnn_forward.3} parent=5 // pred_fallthru
      _
    %p124 = scmp.le.s32.totalorder 1, %s8
    %p125 = scmp.lt.s32.totalorder %s8, 12
    %p126 = pnand %p124, %p125
    %p127 = pneg %p126
    // Predicated region
    $region25: #{gnn_forward.3} parent=5 // pred_check
      _
    $region26: #{gnn_forward.3} parent=5 // pred_check_branch
      %129 = sbr.rel (%p126) target = $region28
    $region27: #{gnn_forward.3} parent=5 // pred_region
      %s130 = ssub.s32 %s8, 1
      %p131 = pneg %p41
      %p132 = pneg %p38
      %s133 = smul.u32 32, %s18
      %p134 = scmp.lt.s32.totalorder %s133, 31
      %s135 = scalar_select %p134, %s133, 31
      %s136 = smul.addr %s135, 4
      %s137 = scalar_lea.vmem %s1, %s136
      %p138 = pneg %p67
      %p139 = pneg %p64
      %p140 = pneg %p93
      %p141 = pneg %p90
      %s142 = smul.u32 32, %s18
      %p143 = scmp.lt.s32.totalorder %s142, 31
      %s144 = scalar_select %p143, %s142, 31
      %s145 = smul.addr %s144, 8
      %s146 = scalar_lea.vmem %s2, %s145
      %s147 = smul.u32 32, %s18
      %p148 = scmp.lt.s32.totalorder %s147, 31
      %s149 = scalar_select %p148, %s147, 31
      %s150 = smul.addr %s149, 4
      %s151 = scalar_lea.vmem %s1, %s150
      %s152 = smul.u32 32, %s18
      %s153 = smul.u32 32, %s18
      %p154 = scmp.lt.s32.totalorder %s153, 31
      %s155 = scalar_select %p154, %s153, 31
      %s156 = smul.addr %s155, 8
      %s157 = scalar_lea.vmem %s2, %s156
      %s158 = smul.u32 32, %s18
      %s160 = smul.u32 %s18, 256
      %v161 = vld [vmem:[%s151] sm:$0xf]
      %v162 = vld [vmem:[%s151 + $0x4] sm:$0xf]
      %v163 = vld [vmem:[%s151 + $0x8] sm:$0xf]
      %v164 = vld [vmem:[%s151 + $0xc] sm:$0xf]
      %v165 = vld [vmem:[%s151 + $0x10] sm:$0xf]
      %v166 = vld [vmem:[%s151 + $0x14] sm:$0xf]
      %v167 = vld [vmem:[%s151 + $0x18] sm:$0xf]
      %v168 = vld [vmem:[%s151 + $0x1c] sm:$0xf]
      %v169 = vld [vmem:[%s151 + $0x20] sm:$0xf]
      %v170 = vld [vmem:[%s151 + $0x24] sm:$0xf]
      %v171 = vld [vmem:[%s151 + $0x28] sm:$0xf]
      %v172 = vld [vmem:[%s151 + $0x2c] sm:$0xf]
      %v173 = vld [vmem:[%s151 + $0x30] sm:$0xf]
      %v174 = vld [vmem:[%s151 + $0x34] sm:$0xf]
      %v175 = vld [vmem:[%s151 + $0x38] sm:$0xf]
      %v176 = vld [vmem:[%s151 + $0x3c] sm:$0xf]
      %v177 = vld [vmem:[%s151 + $0x40] sm:$0xf]
      %v178 = vld [vmem:[%s151 + $0x44] sm:$0xf]
      %v179 = vld [vmem:[%s151 + $0x48] sm:$0xf]
      %v180 = vld [vmem:[%s151 + $0x4c] sm:$0xf]
      %v181 = vld [vmem:[%s151 + $0x50] sm:$0xf]
      %v182 = vld [vmem:[%s151 + $0x54] sm:$0xf]
      %v183 = vld [vmem:[%s151 + $0x58] sm:$0xf]
      %v184 = vld [vmem:[%s151 + $0x5c] sm:$0xf]
      %v185 = vld [vmem:[%s151 + $0x60] sm:$0xf]
      %v186 = vld [vmem:[%s151 + $0x64] sm:$0xf]
      %v187 = vld [vmem:[%s151 + $0x68] sm:$0xf]
      %v188 = vld [vmem:[%s151 + $0x6c] sm:$0xf]
      %v189 = vld [vmem:[%s151 + $0x70] sm:$0xf]
      %v190 = vld [vmem:[%s151 + $0x74] sm:$0xf]
      %v191 = vld [vmem:[%s151 + $0x78] sm:$0xf]
      %v192 = vld [vmem:[%s151 + $0x7c] sm:$0xf]
      %v193 = vunpack.c.l.bf16 %v161
      %v194 = vunpack.c.l.bf16 %v162
      %v195 = vunpack.c.l.bf16 %v163
      %v196 = vunpack.c.l.bf16 %v164
      %v197 = vunpack.c.l.bf16 %v165
      %v198 = vunpack.c.l.bf16 %v166
      %v199 = vunpack.c.l.bf16 %v167
      %v200 = vunpack.c.l.bf16 %v168
      %v201 = vunpack.c.l.bf16 %v169
      %v202 = vunpack.c.l.bf16 %v170
      %v203 = vunpack.c.l.bf16 %v171
      %v204 = vunpack.c.l.bf16 %v172
      %v205 = vunpack.c.l.bf16 %v173
      %v206 = vunpack.c.l.bf16 %v174
      %v207 = vunpack.c.l.bf16 %v175
      %v208 = vunpack.c.l.bf16 %v176
      %v209 = vunpack.c.l.bf16 %v177
      %v210 = vunpack.c.l.bf16 %v178
      %v211 = vunpack.c.l.bf16 %v179
      %v212 = vunpack.c.l.bf16 %v180
      %v213 = vunpack.c.l.bf16 %v181
      %v214 = vunpack.c.l.bf16 %v182
      %v215 = vunpack.c.l.bf16 %v183
      %v216 = vunpack.c.l.bf16 %v184
      %v217 = vunpack.c.l.bf16 %v185
      %v218 = vunpack.c.l.bf16 %v186
      %v219 = vunpack.c.l.bf16 %v187
      %v220 = vunpack.c.l.bf16 %v188
      %v221 = vunpack.c.l.bf16 %v189
      %v222 = vunpack.c.l.bf16 %v190
      %v223 = vunpack.c.l.bf16 %v191
      %v224 = vunpack.c.l.bf16 %v192
      %p225 = scmp.eq.s32.totalorder %s17, 0
      // Predicated region
      $region29: #{gnn_forward.3} parent=27 // pred_check
        %p226 = pneg %p225
      $region30: #{gnn_forward.3} parent=27 // pred_check_branch
        %228 = sbr.rel (%p226) target = $region32
      $region31: #{gnn_forward.3} parent=27 // pred_region
        %v229 = vld [vmem:[%s151] sm:$0xf]
        %v230 = vld [vmem:[%s151 + $0x4] sm:$0xf]
        %v231 = vld [vmem:[%s151 + $0x8] sm:$0xf]
        %v232 = vld [vmem:[%s151 + $0xc] sm:$0xf]
        %v233 = vld [vmem:[%s151 + $0x10] sm:$0xf]
        %v234 = vld [vmem:[%s151 + $0x14] sm:$0xf]
        %v235 = vld [vmem:[%s151 + $0x18] sm:$0xf]
        %v236 = vld [vmem:[%s151 + $0x1c] sm:$0xf]
        %v237 = vld [vmem:[%s151 + $0x20] sm:$0xf]
        %v238 = vld [vmem:[%s151 + $0x24] sm:$0xf]
        %v239 = vld [vmem:[%s151 + $0x28] sm:$0xf]
        %v240 = vld [vmem:[%s151 + $0x2c] sm:$0xf]
        %v241 = vld [vmem:[%s151 + $0x30] sm:$0xf]
        %v242 = vld [vmem:[%s151 + $0x34] sm:$0xf]
        %v243 = vld [vmem:[%s151 + $0x38] sm:$0xf]
        %v244 = vld [vmem:[%s151 + $0x3c] sm:$0xf]
        %v245 = vld [vmem:[%s151 + $0x40] sm:$0xf]
        %v246 = vld [vmem:[%s151 + $0x44] sm:$0xf]
        %v247 = vld [vmem:[%s151 + $0x48] sm:$0xf]
        %v248 = vld [vmem:[%s151 + $0x4c] sm:$0xf]
        %v249 = vld [vmem:[%s151 + $0x50] sm:$0xf]
        %v250 = vld [vmem:[%s151 + $0x54] sm:$0xf]
        %v251 = vld [vmem:[%s151 + $0x58] sm:$0xf]
        %v252 = vld [vmem:[%s151 + $0x5c] sm:$0xf]
        %v253 = vld [vmem:[%s151 + $0x60] sm:$0xf]
        %v254 = vld [vmem:[%s151 + $0x64] sm:$0xf]
        %v255 = vld [vmem:[%s151 + $0x68] sm:$0xf]
        %v256 = vld [vmem:[%s151 + $0x6c] sm:$0xf]
        %v257 = vld [vmem:[%s151 + $0x70] sm:$0xf]
        %v258 = vld [vmem:[%s151 + $0x74] sm:$0xf]
        %v259 = vld [vmem:[%s151 + $0x78] sm:$0xf]
        %v260 = vld [vmem:[%s151 + $0x7c] sm:$0xf]
        %v293 = vunpack.c.l.b16 %v229
        %v294 = vunpack.c.l.b16 %v230
        %v295 = vunpack.c.l.b16 %v231
        %v296 = vunpack.c.l.b16 %v232
        %v297 = vunpack.c.l.b16 %v233
        %v298 = vunpack.c.l.b16 %v234
        %v299 = vunpack.c.l.b16 %v235
        %v300 = vunpack.c.l.b16 %v236
        %v301 = vunpack.c.l.b16 %v237
        %v302 = vunpack.c.l.b16 %v238
        %v303 = vunpack.c.l.b16 %v239
        %v304 = vunpack.c.l.b16 %v240
        %v305 = vunpack.c.l.b16 %v241
        %v306 = vunpack.c.l.b16 %v242
        %v307 = vunpack.c.l.b16 %v243
        %v308 = vunpack.c.l.b16 %v244
        %v309 = vunpack.c.l.b16 %v245
        %v310 = vunpack.c.l.b16 %v246
        %v311 = vunpack.c.l.b16 %v247
        %v312 = vunpack.c.l.b16 %v248
        %v313 = vunpack.c.l.b16 %v249
        %v314 = vunpack.c.l.b16 %v250
        %v315 = vunpack.c.l.b16 %v251
        %v316 = vunpack.c.l.b16 %v252
        %v317 = vunpack.c.l.b16 %v253
        %v318 = vunpack.c.l.b16 %v254
        %v319 = vunpack.c.l.b16 %v255
        %v320 = vunpack.c.l.b16 %v256
        %v321 = vunpack.c.l.b16 %v257
        %v322 = vunpack.c.l.b16 %v258
        %v323 = vunpack.c.l.b16 %v259
        %v324 = vunpack.c.l.b16 %v260
        %v325 = vpack.c.b16 %v294, %v293
        %v326 = vpack.c.b16 %v296, %v295
        %v327 = vpack.c.b16 %v298, %v297
        %v328 = vpack.c.b16 %v300, %v299
        %v329 = vpack.c.b16 %v302, %v301
        %v330 = vpack.c.b16 %v304, %v303
        %v331 = vpack.c.b16 %v306, %v305
        %v332 = vpack.c.b16 %v308, %v307
        %v333 = vpack.c.b16 %v310, %v309
        %v334 = vpack.c.b16 %v312, %v311
        %v335 = vpack.c.b16 %v314, %v313
        %v336 = vpack.c.b16 %v316, %v315
        %v337 = vpack.c.b16 %v318, %v317
        %v338 = vpack.c.b16 %v320, %v319
        %v339 = vpack.c.b16 %v322, %v321
        %v340 = vpack.c.b16 %v324, %v323
        %s357 = sshra.s32 %s160, 4
        %s358 = sand.u32 %s160, 15
        %s359 = smul.addr %s357, 8
        %s360 = scalar_lea.vmem [#allocation2], %s359
        %361 = vst [vmem:[%s360] sm:$0xff] %v325
        %362 = vst [vmem:[%s360 + $0x8] sm:$0xff] %v326
        %363 = vst [vmem:[%s360 + $0x10] sm:$0xff] %v327
        %364 = vst [vmem:[%s360 + $0x18] sm:$0xff] %v328
        %365 = vst [vmem:[%s360 + $0x20] sm:$0xff] %v329
        %366 = vst [vmem:[%s360 + $0x28] sm:$0xff] %v330
        %367 = vst [vmem:[%s360 + $0x30] sm:$0xff] %v331
        %368 = vst [vmem:[%s360 + $0x38] sm:$0xff] %v332
        %369 = vst [vmem:[%s360 + $0x40] sm:$0xff] %v333
        %370 = vst [vmem:[%s360 + $0x48] sm:$0xff] %v334
        %371 = vst [vmem:[%s360 + $0x50] sm:$0xff] %v335
        %372 = vst [vmem:[%s360 + $0x58] sm:$0xff] %v336
        %373 = vst [vmem:[%s360 + $0x60] sm:$0xff] %v337
        %374 = vst [vmem:[%s360 + $0x68] sm:$0xff] %v338
        %375 = vst [vmem:[%s360 + $0x70] sm:$0xff] %v339
        %376 = vst [vmem:[%s360 + $0x78] sm:$0xff] %v340
        %377 = vst [vmem:[%s157] sm:$0xff] %v193
        %378 = vst [vmem:[%s157 + $0x8] sm:$0xff] %v194
        %379 = vst [vmem:[%s157 + $0x10] sm:$0xff] %v195
        %380 = vst [vmem:[%s157 + $0x18] sm:$0xff] %v196
        %381 = vst [vmem:[%s157 + $0x20] sm:$0xff] %v197
        %382 = vst [vmem:[%s157 + $0x28] sm:$0xff] %v198
        %383 = vst [vmem:[%s157 + $0x30] sm:$0xff] %v199
        %384 = vst [vmem:[%s157 + $0x38] sm:$0xff] %v200
        %385 = vst [vmem:[%s157 + $0x40] sm:$0xff] %v201
        %386 = vst [vmem:[%s157 + $0x48] sm:$0xff] %v202
        %387 = vst [vmem:[%s157 + $0x50] sm:$0xff] %v203
        %388 = vst [vmem:[%s157 + $0x58] sm:$0xff] %v204
        %389 = vst [vmem:[%s157 + $0x60] sm:$0xff] %v205
        %390 = vst [vmem:[%s157 + $0x68] sm:$0xff] %v206
        %391 = vst [vmem:[%s157 + $0x70] sm:$0xff] %v207
        %392 = vst [vmem:[%s157 + $0x78] sm:$0xff] %v208
        %393 = vst [vmem:[%s157 + $0x80] sm:$0xff] %v209
        %394 = vst [vmem:[%s157 + $0x88] sm:$0xff] %v210
        %395 = vst [vmem:[%s157 + $0x90] sm:$0xff] %v211
        %396 = vst [vmem:[%s157 + $0x98] sm:$0xff] %v212
        %397 = vst [vmem:[%s157 + $0xa0] sm:$0xff] %v213
        %398 = vst [vmem:[%s157 + $0xa8] sm:$0xff] %v214
        %399 = vst [vmem:[%s157 + $0xb0] sm:$0xff] %v215
        %400 = vst [vmem:[%s157 + $0xb8] sm:$0xff] %v216
        %401 = vst [vmem:[%s157 + $0xc0] sm:$0xff] %v217
        %402 = vst [vmem:[%s157 + $0xc8] sm:$0xff] %v218
        %403 = vst [vmem:[%s157 + $0xd0] sm:$0xff] %v219
        %404 = vst [vmem:[%s157 + $0xd8] sm:$0xff] %v220
        %405 = vst [vmem:[%s157 + $0xe0] sm:$0xff] %v221
        %406 = vst [vmem:[%s157 + $0xe8] sm:$0xff] %v222
        %407 = vst [vmem:[%s157 + $0xf0] sm:$0xff] %v223
        %408 = vst [vmem:[%s157 + $0xf8] sm:$0xff] %v224
      $region32: #{gnn_forward.3} parent=27 // pred_fallthru
        _
      %p409 = scmp.lt.s32.totalorder %s17, 0
      %s410 = ssub.s32 0, %s17
      %s411 = scalar_select %p409, %s410, %s17
      %s412 = sand.u32 %s411, 1
      %s413 = ssub.s32 0, %s412
      %s414 = scalar_select %p409, %s413, %s412
      %p415 = scmp.ne.s32.totalorder %s414, 0
      %p416 = scmp.lt.s32.totalorder %s414, 0
      %p417 = pnand %p416, %p415
      %p418 = pneg %p417
      %s419 = sadd.s32 %s414, 2
      %s420 = scalar_select %p418, %s419, %s414
      %p421 = scmp.eq.s32.totalorder %s420, 1
      // Predicated region
      $region33: #{gnn_forward.3} parent=27 // pred_check
        %p422 = pneg %p421
      $region34: #{gnn_forward.3} parent=27 // pred_check_branch
        %424 = sbr.rel (%p422) target = $region36
      $region35: #{gnn_forward.3} parent=27 // pred_region
        %s425 = sshra.s32 %s160, 3
        %s426 = sand.u32 %s160, 7
        %s427 = smul.u32 %s425, 2
        %s428 = smul.addr %s427, 4
        %s429 = scalar_lea.vmem %s0, %s428
        %v430 = vld [vmem:[%s429] sm:$0xff]
        %v431 = vld [vmem:[%s429 + $0x8] sm:$0xff]
        %v432 = vld [vmem:[%s429 + $0x10] sm:$0xff]
        %v433 = vld [vmem:[%s429 + $0x18] sm:$0xff]
        %v434 = vld [vmem:[%s429 + $0x20] sm:$0xff]
        %v435 = vld [vmem:[%s429 + $0x28] sm:$0xff]
        %v436 = vld [vmem:[%s429 + $0x30] sm:$0xff]
        %v437 = vld [vmem:[%s429 + $0x38] sm:$0xff]
        %v438 = vld [vmem:[%s429 + $0x40] sm:$0xff]
        %v439 = vld [vmem:[%s429 + $0x48] sm:$0xff]
        %v440 = vld [vmem:[%s429 + $0x50] sm:$0xff]
        %v441 = vld [vmem:[%s429 + $0x58] sm:$0xff]
        %v442 = vld [vmem:[%s429 + $0x60] sm:$0xff]
        %v443 = vld [vmem:[%s429 + $0x68] sm:$0xff]
        %v444 = vld [vmem:[%s429 + $0x70] sm:$0xff]
        %v445 = vld [vmem:[%s429 + $0x78] sm:$0xff]
        %v446 = vld [vmem:[%s429 + $0x80] sm:$0xff]
        %v447 = vld [vmem:[%s429 + $0x88] sm:$0xff]
        %v448 = vld [vmem:[%s429 + $0x90] sm:$0xff]
        %v449 = vld [vmem:[%s429 + $0x98] sm:$0xff]
        %v450 = vld [vmem:[%s429 + $0xa0] sm:$0xff]
        %v451 = vld [vmem:[%s429 + $0xa8] sm:$0xff]
        %v452 = vld [vmem:[%s429 + $0xb0] sm:$0xff]
        %v453 = vld [vmem:[%s429 + $0xb8] sm:$0xff]
        %v454 = vld [vmem:[%s429 + $0xc0] sm:$0xff]
        %v455 = vld [vmem:[%s429 + $0xc8] sm:$0xff]
        %v456 = vld [vmem:[%s429 + $0xd0] sm:$0xff]
        %v457 = vld [vmem:[%s429 + $0xd8] sm:$0xff]
        %v458 = vld [vmem:[%s429 + $0xe0] sm:$0xff]
        %v459 = vld [vmem:[%s429 + $0xe8] sm:$0xff]
        %v460 = vld [vmem:[%s429 + $0xf0] sm:$0xff]
        %v461 = vld [vmem:[%s429 + $0xf8] sm:$0xff]
        %v462 = vld [vmem:[#allocation2] sm:$0xff]
        %v463 = vld [vmem:[#allocation2 + $0x8] sm:$0xff]
        %v464 = vld [vmem:[#allocation2 + $0x10] sm:$0xff]
        %v465 = vld [vmem:[#allocation2 + $0x18] sm:$0xff]
        %v466 = vld [vmem:[#allocation2 + $0x20] sm:$0xff]
        %v467 = vld [vmem:[#allocation2 + $0x28] sm:$0xff]
        %v468 = vld [vmem:[#allocation2 + $0x30] sm:$0xff]
        %v469 = vld [vmem:[#allocation2 + $0x38] sm:$0xff]
        %v470 = vld [vmem:[#allocation2 + $0x40] sm:$0xff]
        %v471 = vld [vmem:[#allocation2 + $0x48] sm:$0xff]
        %v472 = vld [vmem:[#allocation2 + $0x50] sm:$0xff]
        %v473 = vld [vmem:[#allocation2 + $0x58] sm:$0xff]
        %v474 = vld [vmem:[#allocation2 + $0x60] sm:$0xff]
        %v475 = vld [vmem:[#allocation2 + $0x68] sm:$0xff]
        %v476 = vld [vmem:[#allocation2 + $0x70] sm:$0xff]
        %v477 = vld [vmem:[#allocation2 + $0x78] sm:$0xff]
        %v478 = vmul.f32 %v193, 0.1
        %v479 = vmul.f32 %v194, 0.1
        %v480 = vmul.f32 %v195, 0.1
        %v481 = vmul.f32 %v196, 0.1
        %v482 = vmul.f32 %v197, 0.1
        %v483 = vmul.f32 %v198, 0.1
        %v484 = vmul.f32 %v199, 0.1
        %v485 = vmul.f32 %v200, 0.1
        %v486 = vmul.f32 %v201, 0.1
        %v487 = vmul.f32 %v202, 0.1
        %v488 = vmul.f32 %v203, 0.1
        %v489 = vmul.f32 %v204, 0.1
        %v490 = vmul.f32 %v205, 0.1
        %v491 = vmul.f32 %v206, 0.1
        %v492 = vmul.f32 %v207, 0.1
        %v493 = vmul.f32 %v208, 0.1
        %v494 = vmul.f32 %v209, 0.1
        %v495 = vmul.f32 %v210, 0.1
        %v496 = vmul.f32 %v211, 0.1
        %v497 = vmul.f32 %v212, 0.1
        %v498 = vmul.f32 %v213, 0.1
        %v499 = vmul.f32 %v214, 0.1
        %v500 = vmul.f32 %v215, 0.1
        %v501 = vmul.f32 %v216, 0.1
        %v502 = vmul.f32 %v217, 0.1
        %v503 = vmul.f32 %v218, 0.1
        %v504 = vmul.f32 %v219, 0.1
        %v505 = vmul.f32 %v220, 0.1
        %v506 = vmul.f32 %v221, 0.1
        %v507 = vmul.f32 %v222, 0.1
        %v508 = vmul.f32 %v223, 0.1
        %v509 = vmul.f32 %v224, 0.1
        %v542 = vunpack.c.l.b16 %v430
        %v543 = vunpack.c.h.b16 %v430
        %v544 = vunpack.c.l.b16 %v431
        %v545 = vunpack.c.h.b16 %v431
        %v546 = vunpack.c.l.b16 %v432
        %v547 = vunpack.c.h.b16 %v432
        %v548 = vunpack.c.l.b16 %v433
        %v549 = vunpack.c.h.b16 %v433
        %v550 = vunpack.c.l.b16 %v434
        %v551 = vunpack.c.h.b16 %v434
        %v552 = vunpack.c.l.b16 %v435
        %v553 = vunpack.c.h.b16 %v435
        %v554 = vunpack.c.l.b16 %v436
        %v555 = vunpack.c.h.b16 %v436
        %v556 = vunpack.c.l.b16 %v437
        %v557 = vunpack.c.h.b16 %v437
        %v558 = vunpack.c.l.b16 %v438
        %v559 = vunpack.c.h.b16 %v438
        %v560 = vunpack.c.l.b16 %v439
        %v561 = vunpack.c.h.b16 %v439
        %v562 = vunpack.c.l.b16 %v440
        %v563 = vunpack.c.h.b16 %v440
        %v564 = vunpack.c.l.b16 %v441
        %v565 = vunpack.c.h.b16 %v441
        %v566 = vunpack.c.l.b16 %v442
        %v567 = vunpack.c.h.b16 %v442
        %v568 = vunpack.c.l.b16 %v443
        %v569 = vunpack.c.h.b16 %v443
        %v570 = vunpack.c.l.b16 %v444
        %v571 = vunpack.c.h.b16 %v444
        %v572 = vunpack.c.l.b16 %v445
        %v573 = vunpack.c.h.b16 %v445
        %v574 = vunpack.c.l.b16 %v446
        %v575 = vunpack.c.h.b16 %v446
        %v576 = vunpack.c.l.b16 %v447
        %v577 = vunpack.c.h.b16 %v447
        %v578 = vunpack.c.l.b16 %v448
        %v579 = vunpack.c.h.b16 %v448
        %v580 = vunpack.c.l.b16 %v449
        %v581 = vunpack.c.h.b16 %v449
        %v582 = vunpack.c.l.b16 %v450
        %v583 = vunpack.c.h.b16 %v450
        %v584 = vunpack.c.l.b16 %v451
        %v585 = vunpack.c.h.b16 %v451
        %v586 = vunpack.c.l.b16 %v452
        %v587 = vunpack.c.h.b16 %v452
        %v588 = vunpack.c.l.b16 %v453
        %v589 = vunpack.c.h.b16 %v453
        %v590 = vunpack.c.l.b16 %v454
        %v591 = vunpack.c.h.b16 %v454
        %v592 = vunpack.c.l.b16 %v455
        %v593 = vunpack.c.h.b16 %v455
        %v594 = vunpack.c.l.b16 %v456
        %v595 = vunpack.c.h.b16 %v456
        %v596 = vunpack.c.l.b16 %v457
        %v597 = vunpack.c.h.b16 %v457
        %v598 = vunpack.c.l.b16 %v458
        %v599 = vunpack.c.h.b16 %v458
        %v600 = vunpack.c.l.b16 %v459
        %v601 = vunpack.c.h.b16 %v459
        %v602 = vunpack.c.l.b16 %v460
        %v603 = vunpack.c.h.b16 %v460
        %v604 = vunpack.c.l.b16 %v461
        %v605 = vunpack.c.h.b16 %v461
        %v606 = vpack.c.b16 %v544, %v542
        %v607 = vpack.c.b16 %v545, %v543
        %v608 = vpack.c.b16 %v548, %v546
        %v609 = vpack.c.b16 %v549, %v547
        %v610 = vpack.c.b16 %v552, %v550
        %v611 = vpack.c.b16 %v553, %v551
        %v612 = vpack.c.b16 %v556, %v554
        %v613 = vpack.c.b16 %v557, %v555
        %v614 = vpack.c.b16 %v560, %v558
        %v615 = vpack.c.b16 %v561, %v559
        %v616 = vpack.c.b16 %v564, %v562
        %v617 = vpack.c.b16 %v565, %v563
        %v618 = vpack.c.b16 %v568, %v566
        %v619 = vpack.c.b16 %v569, %v567
        %v620 = vpack.c.b16 %v572, %v570
        %v621 = vpack.c.b16 %v573, %v571
        %v622 = vpack.c.b16 %v576, %v574
        %v623 = vpack.c.b16 %v577, %v575
        %v624 = vpack.c.b16 %v580, %v578
        %v625 = vpack.c.b16 %v581, %v579
        %v626 = vpack.c.b16 %v584, %v582
        %v627 = vpack.c.b16 %v585, %v583
        %v628 = vpack.c.b16 %v588, %v586
        %v629 = vpack.c.b16 %v589, %v587
        %v630 = vpack.c.b16 %v592, %v590
        %v631 = vpack.c.b16 %v593, %v591
        %v632 = vpack.c.b16 %v596, %v594
        %v633 = vpack.c.b16 %v597, %v595
        %v634 = vpack.c.b16 %v600, %v598
        %v635 = vpack.c.b16 %v601, %v599
        %v636 = vpack.c.b16 %v604, %v602
        %v637 = vpack.c.b16 %v605, %v603
        %670 = vmatprep.subr.bf16.mxu0 0
        %671 = vmatpush1.bf16.msra.mxu0 %v462
        %672 = vmatprep.subr.bf16.mxu0 0
        %673 = vmatpush1.bf16.msra.mxu0 %v463
        %674 = vmatprep.subr.bf16.mxu0 0
        %675 = vmatpush1.bf16.msra.mxu0 %v464
        %676 = vmatprep.subr.bf16.mxu0 0
        %677 = vmatpush1.bf16.msra.mxu0 %v465
        %678 = vmatprep.subr.bf16.mxu0 0
        %679 = vmatpush1.bf16.msra.mxu0 %v466
        %680 = vmatprep.subr.bf16.mxu0 0
        %681 = vmatpush1.bf16.msra.mxu0 %v467
        %682 = vmatprep.subr.bf16.mxu0 0
        %683 = vmatpush1.bf16.msra.mxu0 %v468
        %684 = vmatprep.subr.bf16.mxu0 0
        %685 = vmatpush1.bf16.msra.mxu0 %v469
        %686 = vmatprep.subr.bf16.mxu0 0
        %687 = vmatpush1.bf16.msra.mxu0 %v470
        %688 = vmatprep.subr.bf16.mxu0 0
        %689 = vmatpush1.bf16.msra.mxu0 %v471
        %690 = vmatprep.subr.bf16.mxu0 0
        %691 = vmatpush1.bf16.msra.mxu0 %v472
        %692 = vmatprep.subr.bf16.mxu0 0
        %693 = vmatpush1.bf16.msra.mxu0 %v473
        %694 = vmatprep.subr.bf16.mxu0 0
        %695 = vmatpush1.bf16.msra.mxu0 %v474
        %696 = vmatprep.subr.bf16.mxu0 0
        %697 = vmatpush1.bf16.msra.mxu0 %v475
        %698 = vmatprep.subr.bf16.mxu0 0
        %699 = vmatpush1.bf16.msra.mxu0 %v476
        %700 = vmatprep.subr.bf16.mxu0 0
        %701 = vmatpush1.bf16.msra.mxu0 %v477
        %702 = vmatprep.mubr.bf16.mxu0 %v607
        %703 = vmatmul.mubr.bf16.gmra.mrb[0].mxu0 %v606
        %v704 = vpop.f32.mrb[0].mxu0
        %v705 = vadd.f32 %v478, %v704
        %v706 = vpop.f32.mrb[0].mxu0
        %v707 = vpop.f32.mrb[0].mxu0
        %v708 = vadd.f32 %v479, %v707
        %v709 = vpop.f32.mrb[0].mxu0
        %710 = vmatprep.mubr.bf16.mxu0 %v609
        %711 = vmatmul.mubr.bf16.gmra.mrb[0].mxu0 %v608
        %v712 = vpop.f32.mrb[0].mxu0
        %v713 = vadd.f32 %v480, %v712
        %v714 = vpop.f32.mrb[0].mxu0
        %v715 = vpop.f32.mrb[0].mxu0
        %v716 = vadd.f32 %v481, %v715
        %v717 = vpop.f32.mrb[0].mxu0
        %718 = vmatprep.mubr.bf16.mxu0 %v611
        %719 = vmatmul.mubr.bf16.gmra.mrb[0].mxu0 %v610
        %v720 = vpop.f32.mrb[0].mxu0
        %v721 = vadd.f32 %v482, %v720
        %v722 = vpop.f32.mrb[0].mxu0
        %v723 = vpop.f32.mrb[0].mxu0
        %v724 = vadd.f32 %v483, %v723
        %v725 = vpop.f32.mrb[0].mxu0
        %726 = vmatprep.mubr.bf16.mxu0 %v613
        %727 = vmatmul.mubr.bf16.gmra.mrb[0].mxu0 %v612
        %v728 = vpop.f32.mrb[0].mxu0
        %v729 = vadd.f32 %v484, %v728
        %v730 = vpop.f32.mrb[0].mxu0
        %v731 = vpop.f32.mrb[0].mxu0
        %v732 = vadd.f32 %v485, %v731
        %v733 = vpop.f32.mrb[0].mxu0
        %734 = vmatprep.mubr.bf16.mxu0 %v615
        %735 = vmatmul.mubr.bf16.gmra.mrb[0].mxu0 %v614
        %v736 = vpop.f32.mrb[0].mxu0
        %v737 = vadd.f32 %v486, %v736
        %v738 = vpop.f32.mrb[0].mxu0
        %v739 = vpop.f32.mrb[0].mxu0
        %v740 = vadd.f32 %v487, %v739
        %v741 = vpop.f32.mrb[0].mxu0
        %742 = vmatprep.mubr.bf16.mxu0 %v617
        %743 = vmatmul.mubr.bf16.gmra.mrb[0].mxu0 %v616
        %v744 = vpop.f32.mrb[0].mxu0
        %v745 = vadd.f32 %v488, %v744
        %v746 = vpop.f32.mrb[0].mxu0
        %v747 = vpop.f32.mrb[0].mxu0
        %v748 = vadd.f32 %v489, %v747
        %v749 = vpop.f32.mrb[0].mxu0
        %750 = vmatprep.mubr.bf16.mxu0 %v619
        %751 = vmatmul.mubr.bf16.gmra.mrb[0].mxu0 %v618
        %v752 = vpop.f32.mrb[0].mxu0
        %v753 = vadd.f32 %v490, %v752
        %v754 = vpop.f32.mrb[0].mxu0
        %v755 = vpop.f32.mrb[0].mxu0
        %v756 = vadd.f32 %v491, %v755
        %v757 = vpop.f32.mrb[0].mxu0
        %758 = vmatprep.mubr.bf16.mxu0 %v621
        %759 = vmatmul.mubr.bf16.gmra.mrb[0].mxu0 %v620
        %v760 = vpop.f32.mrb[0].mxu0
        %v761 = vadd.f32 %v492, %v760
        %v762 = vpop.f32.mrb[0].mxu0
        %v763 = vpop.f32.mrb[0].mxu0
        %v764 = vadd.f32 %v493, %v763
        %v765 = vpop.f32.mrb[0].mxu0
        %766 = vmatprep.mubr.bf16.mxu0 %v623
        %767 = vmatmul.mubr.bf16.gmra.mrb[0].mxu0 %v622
        %v768 = vpop.f32.mrb[0].mxu0
        %v769 = vadd.f32 %v494, %v768
        %v770 = vpop.f32.mrb[0].mxu0
        %v771 = vpop.f32.mrb[0].mxu0
        %v772 = vadd.f32 %v495, %v771
        %v773 = vpop.f32.mrb[0].mxu0
        %774 = vmatprep.mubr.bf16.mxu0 %v625
        %775 = vmatmul.mubr.bf16.gmra.mrb[0].mxu0 %v624
        %v776 = vpop.f32.mrb[0].mxu0
        %v777 = vadd.f32 %v496, %v776
        %v778 = vpop.f32.mrb[0].mxu0
        %v779 = vpop.f32.mrb[0].mxu0
        %v780 = vadd.f32 %v497, %v779
        %v781 = vpop.f32.mrb[0].mxu0
        %782 = vmatprep.mubr.bf16.mxu0 %v627
        %783 = vmatmul.mubr.bf16.gmra.mrb[0].mxu0 %v626
        %v784 = vpop.f32.mrb[0].mxu0
        %v785 = vadd.f32 %v498, %v784
        %v786 = vpop.f32.mrb[0].mxu0
        %v787 = vpop.f32.mrb[0].mxu0
        %v788 = vadd.f32 %v499, %v787
        %v789 = vpop.f32.mrb[0].mxu0
        %790 = vmatprep.mubr.bf16.mxu0 %v629
        %791 = vmatmul.mubr.bf16.gmra.mrb[0].mxu0 %v628
        %v792 = vpop.f32.mrb[0].mxu0
        %v793 = vadd.f32 %v500, %v792
        %v794 = vpop.f32.mrb[0].mxu0
        %v795 = vpop.f32.mrb[0].mxu0
        %v796 = vadd.f32 %v501, %v795
        %v797 = vpop.f32.mrb[0].mxu0
        %798 = vmatprep.mubr.bf16.mxu0 %v631
        %799 = vmatmul.mubr.bf16.gmra.mrb[0].mxu0 %v630
        %v800 = vpop.f32.mrb[0].mxu0
        %v801 = vadd.f32 %v502, %v800
        %v802 = vpop.f32.mrb[0].mxu0
        %v803 = vpop.f32.mrb[0].mxu0
        %v804 = vadd.f32 %v503, %v803
        %v805 = vpop.f32.mrb[0].mxu0
        %806 = vmatprep.mubr.bf16.mxu0 %v633
        %807 = vmatmul.mubr.bf16.gmra.mrb[0].mxu0 %v632
        %v808 = vpop.f32.mrb[0].mxu0
        %v809 = vadd.f32 %v504, %v808
        %v810 = vpop.f32.mrb[0].mxu0
        %v811 = vpop.f32.mrb[0].mxu0
        %v812 = vadd.f32 %v505, %v811
        %v813 = vpop.f32.mrb[0].mxu0
        %814 = vmatprep.mubr.bf16.mxu0 %v635
        %815 = vmatmul.mubr.bf16.gmra.mrb[0].mxu0 %v634
        %v816 = vpop.f32.mrb[0].mxu0
        %v817 = vadd.f32 %v506, %v816
        %v818 = vpop.f32.mrb[0].mxu0
        %v819 = vpop.f32.mrb[0].mxu0
        %v820 = vadd.f32 %v507, %v819
        %v821 = vpop.f32.mrb[0].mxu0
        %822 = vmatprep.mubr.bf16.mxu0 %v637
        %823 = vmatmul.mubr.bf16.gmra.mrb[0].mxu0 %v636
        %v824 = vpop.f32.mrb[0].mxu0
        %v825 = vadd.f32 %v508, %v824
        %v826 = vpop.f32.mrb[0].mxu0
        %v827 = vpop.f32.mrb[0].mxu0
        %v828 = vadd.f32 %v509, %v827
        %v829 = vpop.f32.mrb[0].mxu0
        %830 = vdwg.mxu0
        %v831 = vpack.c.bf16 %v708, %v705
        %v832 = vpack.c.bf16 %v716, %v713
        %v833 = vpack.c.bf16 %v724, %v721
        %v834 = vpack.c.bf16 %v732, %v729
        %v835 = vpack.c.bf16 %v740, %v737
        %v836 = vpack.c.bf16 %v748, %v745
        %v837 = vpack.c.bf16 %v756, %v753
        %v838 = vpack.c.bf16 %v764, %v761
        %v839 = vpack.c.bf16 %v772, %v769
        %v840 = vpack.c.bf16 %v780, %v777
        %v841 = vpack.c.bf16 %v788, %v785
        %v842 = vpack.c.bf16 %v796, %v793
        %v843 = vpack.c.bf16 %v804, %v801
        %v844 = vpack.c.bf16 %v812, %v809
        %v845 = vpack.c.bf16 %v820, %v817
        %v846 = vpack.c.bf16 %v828, %v825
        %s847 = sshra.s32 %s160, 4
        %s848 = sand.u32 %s160, 15
        %s849 = sadd.s32 %s847, 16
        %s850 = smul.addr %s849, 8
        %s851 = scalar_lea.vmem [#allocation2], %s850
        %852 = vst [vmem:[%s851] sm:$0xff] %v831
        %853 = vst [vmem:[%s851 + $0x8] sm:$0xff] %v832
        %854 = vst [vmem:[%s851 + $0x10] sm:$0xff] %v833
        %855 = vst [vmem:[%s851 + $0x18] sm:$0xff] %v834
        %856 = vst [vmem:[%s851 + $0x20] sm:$0xff] %v835
        %857 = vst [vmem:[%s851 + $0x28] sm:$0xff] %v836
        %858 = vst [vmem:[%s851 + $0x30] sm:$0xff] %v837
        %859 = vst [vmem:[%s851 + $0x38] sm:$0xff] %v838
        %860 = vst [vmem:[%s851 + $0x40] sm:$0xff] %v839
        %861 = vst [vmem:[%s851 + $0x48] sm:$0xff] %v840
        %862 = vst [vmem:[%s851 + $0x50] sm:$0xff] %v841
        %863 = vst [vmem:[%s851 + $0x58] sm:$0xff] %v842
        %864 = vst [vmem:[%s851 + $0x60] sm:$0xff] %v843
        %865 = vst [vmem:[%s851 + $0x68] sm:$0xff] %v844
        %866 = vst [vmem:[%s851 + $0x70] sm:$0xff] %v845
        %867 = vst [vmem:[%s851 + $0x78] sm:$0xff] %v846
        %868 = vst [vmem:[%s157] sm:$0xff] %v705
        %869 = vst [vmem:[%s157 + $0x8] sm:$0xff] %v708
        %870 = vst [vmem:[%s157 + $0x10] sm:$0xff] %v713
        %871 = vst [vmem:[%s157 + $0x18] sm:$0xff] %v716
        %872 = vst [vmem:[%s157 + $0x20] sm:$0xff] %v721
        %873 = vst [vmem:[%s157 + $0x28] sm:$0xff] %v724
        %874 = vst [vmem:[%s157 + $0x30] sm:$0xff] %v729
        %875 = vst [vmem:[%s157 + $0x38] sm:$0xff] %v732
        %876 = vst [vmem:[%s157 + $0x40] sm:$0xff] %v737
        %877 = vst [vmem:[%s157 + $0x48] sm:$0xff] %v740
        %878 = vst [vmem:[%s157 + $0x50] sm:$0xff] %v745
        %879 = vst [vmem:[%s157 + $0x58] sm:$0xff] %v748
        %880 = vst [vmem:[%s157 + $0x60] sm:$0xff] %v753
        %881 = vst [vmem:[%s157 + $0x68] sm:$0xff] %v756
        %882 = vst [vmem:[%s157 + $0x70] sm:$0xff] %v761
        %883 = vst [vmem:[%s157 + $0x78] sm:$0xff] %v764
        %884 = vst [vmem:[%s157 + $0x80] sm:$0xff] %v769
        %885 = vst [vmem:[%s157 + $0x88] sm:$0xff] %v772
        %886 = vst [vmem:[%s157 + $0x90] sm:$0xff] %v777
        %887 = vst [vmem:[%s157 + $0x98] sm:$0xff] %v780
        %888 = vst [vmem:[%s157 + $0xa0] sm:$0xff] %v785
        %889 = vst [vmem:[%s157 + $0xa8] sm:$0xff] %v788
        %890 = vst [vmem:[%s157 + $0xb0] sm:$0xff] %v793
        %891 = vst [vmem:[%s157 + $0xb8] sm:$0xff] %v796
        %892 = vst [vmem:[%s157 + $0xc0] sm:$0xff] %v801
        %893 = vst [vmem:[%s157 + $0xc8] sm:$0xff] %v804
        %894 = vst [vmem:[%s157 + $0xd0] sm:$0xff] %v809
        %895 = vst [vmem:[%s157 + $0xd8] sm:$0xff] %v812
        %896 = vst [vmem:[%s157 + $0xe0] sm:$0xff] %v817
        %897 = vst [vmem:[%s157 + $0xe8] sm:$0xff] %v820
        %898 = vst [vmem:[%s157 + $0xf0] sm:$0xff] %v825
        %899 = vst [vmem:[%s157 + $0xf8] sm:$0xff] %v828
      $region36: #{gnn_forward.3} parent=27 // pred_fallthru
        _
      %p900 = scmp.ge.s32.totalorder %s17, 2
      %p901 = scmp.eq.s32.totalorder %s420, 0
      %p902 = pnand %p900, %p901
      %p903 = pneg %p902
      // Predicated region
      $region37: #{gnn_forward.3} parent=27 // pred_check
        _
      $region38: #{gnn_forward.3} parent=27 // pred_check_branch
        %905 = sbr.rel (%p902) target = $region40
      $region39: #{gnn_forward.3} parent=27 // pred_region
        %s906 = sshra.s32 %s160, 3
        %s907 = sand.u32 %s160, 7
        %s908 = smul.u32 %s906, 2
        %s909 = smul.addr %s908, 4
        %s910 = scalar_lea.vmem %s0, %s909
        %v911 = vld [vmem:[%s910] sm:$0xff]
        %v912 = vld [vmem:[%s910 + $0x8] sm:$0xff]
        %v913 = vld [vmem:[%s910 + $0x10] sm:$0xff]
        %v914 = vld [vmem:[%s910 + $0x18] sm:$0xff]
        %v915 = vld [vmem:[%s910 + $0x20] sm:$0xff]
        %v916 = vld [vmem:[%s910 + $0x28] sm:$0xff]
        %v917 = vld [vmem:[%s910 + $0x30] sm:$0xff]
        %v918 = vld [vmem:[%s910 + $0x38] sm:$0xff]
        %v919 = vld [vmem:[%s910 + $0x40] sm:$0xff]
        %v920 = vld [vmem:[%s910 + $0x48] sm:$0xff]
        %v921 = vld [vmem:[%s910 + $0x50] sm:$0xff]
        %v922 = vld [vmem:[%s910 + $0x58] sm:$0xff]
        %v923 = vld [vmem:[%s910 + $0x60] sm:$0xff]
        %v924 = vld [vmem:[%s910 + $0x68] sm:$0xff]
        %v925 = vld [vmem:[%s910 + $0x70] sm:$0xff]
        %v926 = vld [vmem:[%s910 + $0x78] sm:$0xff]
        %v927 = vld [vmem:[%s910 + $0x80] sm:$0xff]
        %v928 = vld [vmem:[%s910 + $0x88] sm:$0xff]
        %v929 = vld [vmem:[%s910 + $0x90] sm:$0xff]
        %v930 = vld [vmem:[%s910 + $0x98] sm:$0xff]
        %v931 = vld [vmem:[%s910 + $0xa0] sm:$0xff]
        %v932 = vld [vmem:[%s910 + $0xa8] sm:$0xff]
        %v933 = vld [vmem:[%s910 + $0xb0] sm:$0xff]
        %v934 = vld [vmem:[%s910 + $0xb8] sm:$0xff]
        %v935 = vld [vmem:[%s910 + $0xc0] sm:$0xff]
        %v936 = vld [vmem:[%s910 + $0xc8] sm:$0xff]
        %v937 = vld [vmem:[%s910 + $0xd0] sm:$0xff]
        %v938 = vld [vmem:[%s910 + $0xd8] sm:$0xff]
        %v939 = vld [vmem:[%s910 + $0xe0] sm:$0xff]
        %v940 = vld [vmem:[%s910 + $0xe8] sm:$0xff]
        %v941 = vld [vmem:[%s910 + $0xf0] sm:$0xff]
        %v942 = vld [vmem:[%s910 + $0xf8] sm:$0xff]
        %s943 = scalar_lea.vmem [#allocation2], 128
        %v944 = vld [vmem:[%s943] sm:$0xff]
        %v945 = vld [vmem:[%s943 + $0x8] sm:$0xff]
        %v946 = vld [vmem:[%s943 + $0x10] sm:$0xff]
        %v947 = vld [vmem:[%s943 + $0x18] sm:$0xff]
        %v948 = vld [vmem:[%s943 + $0x20] sm:$0xff]
        %v949 = vld [vmem:[%s943 + $0x28] sm:$0xff]
        %v950 = vld [vmem:[%s943 + $0x30] sm:$0xff]
        %v951 = vld [vmem:[%s943 + $0x38] sm:$0xff]
        %v952 = vld [vmem:[%s943 + $0x40] sm:$0xff]
        %v953 = vld [vmem:[%s943 + $0x48] sm:$0xff]
        %v954 = vld [vmem:[%s943 + $0x50] sm:$0xff]
        %v955 = vld [vmem:[%s943 + $0x58] sm:$0xff]
        %v956 = vld [vmem:[%s943 + $0x60] sm:$0xff]
        %v957 = vld [vmem:[%s943 + $0x68] sm:$0xff]
        %v958 = vld [vmem:[%s943 + $0x70] sm:$0xff]
        %v959 = vld [vmem:[%s943 + $0x78] sm:$0xff]
        %v960 = vmul.f32 %v193, 0.1
        %v961 = vmul.f32 %v194, 0.1
        %v962 = vmul.f32 %v195, 0.1
        %v963 = vmul.f32 %v196, 0.1
        %v964 = vmul.f32 %v197, 0.1
        %v965 = vmul.f32 %v198, 0.1
        %v966 = vmul.f32 %v199, 0.1
        %v967 = vmul.f32 %v200, 0.1
        %v968 = vmul.f32 %v201, 0.1
        %v969 = vmul.f32 %v202, 0.1
        %v970 = vmul.f32 %v203, 0.1
        %v971 = vmul.f32 %v204, 0.1
        %v972 = vmul.f32 %v205, 0.1
        %v973 = vmul.f32 %v206, 0.1
        %v974 = vmul.f32 %v207, 0.1
        %v975 = vmul.f32 %v208, 0.1
        %v976 = vmul.f32 %v209, 0.1
        %v977 = vmul.f32 %v210, 0.1
        %v978 = vmul.f32 %v211, 0.1
        %v979 = vmul.f32 %v212, 0.1
        %v980 = vmul.f32 %v213, 0.1
        %v981 = vmul.f32 %v214, 0.1
        %v982 = vmul.f32 %v215, 0.1
        %v983 = vmul.f32 %v216, 0.1
        %v984 = vmul.f32 %v217, 0.1
        %v985 = vmul.f32 %v218, 0.1
        %v986 = vmul.f32 %v219, 0.1
        %v987 = vmul.f32 %v220, 0.1
        %v988 = vmul.f32 %v221, 0.1
        %v989 = vmul.f32 %v222, 0.1
        %v990 = vmul.f32 %v223, 0.1
        %v991 = vmul.f32 %v224, 0.1
        %v1024 = vunpack.c.l.b16 %v911
        %v1025 = vunpack.c.h.b16 %v911
        %v1026 = vunpack.c.l.b16 %v912
        %v1027 = vunpack.c.h.b16 %v912
        %v1028 = vunpack.c.l.b16 %v913
        %v1029 = vunpack.c.h.b16 %v913
        %v1030 = vunpack.c.l.b16 %v914
        %v1031 = vunpack.c.h.b16 %v914
        %v1032 = vunpack.c.l.b16 %v915
        %v1033 = vunpack.c.h.b16 %v915
        %v1034 = vunpack.c.l.b16 %v916
        %v1035 = vunpack.c.h.b16 %v916
        %v1036 = vunpack.c.l.b16 %v917
        %v1037 = vunpack.c.h.b16 %v917
        %v1038 = vunpack.c.l.b16 %v918
        %v1039 = vunpack.c.h.b16 %v918
        %v1040 = vunpack.c.l.b16 %v919
        %v1041 = vunpack.c.h.b16 %v919
        %v1042 = vunpack.c.l.b16 %v920
        %v1043 = vunpack.c.h.b16 %v920
        %v1044 = vunpack.c.l.b16 %v921
        %v1045 = vunpack.c.h.b16 %v921
        %v1046 = vunpack.c.l.b16 %v922
        %v1047 = vunpack.c.h.b16 %v922
        %v1048 = vunpack.c.l.b16 %v923
        %v1049 = vunpack.c.h.b16 %v923
        %v1050 = vunpack.c.l.b16 %v924
        %v1051 = vunpack.c.h.b16 %v924
        %v1052 = vunpack.c.l.b16 %v925
        %v1053 = vunpack.c.h.b16 %v925
        %v1054 = vunpack.c.l.b16 %v926
        %v1055 = vunpack.c.h.b16 %v926
        %v1056 = vunpack.c.l.b16 %v927
        %v1057 = vunpack.c.h.b16 %v927
        %v1058 = vunpack.c.l.b16 %v928
        %v1059 = vunpack.c.h.b16 %v928
        %v1060 = vunpack.c.l.b16 %v929
        %v1061 = vunpack.c.h.b16 %v929
        %v1062 = vunpack.c.l.b16 %v930
        %v1063 = vunpack.c.h.b16 %v930
        %v1064 = vunpack.c.l.b16 %v931
        %v1065 = vunpack.c.h.b16 %v931
        %v1066 = vunpack.c.l.b16 %v932
        %v1067 = vunpack.c.h.b16 %v932
        %v1068 = vunpack.c.l.b16 %v933
        %v1069 = vunpack.c.h.b16 %v933
        %v1070 = vunpack.c.l.b16 %v934
        %v1071 = vunpack.c.h.b16 %v934
        %v1072 = vunpack.c.l.b16 %v935
        %v1073 = vunpack.c.h.b16 %v935
        %v1074 = vunpack.c.l.b16 %v936
        %v1075 = vunpack.c.h.b16 %v936
        %v1076 = vunpack.c.l.b16 %v937
        %v1077 = vunpack.c.h.b16 %v937
        %v1078 = vunpack.c.l.b16 %v938
        %v1079 = vunpack.c.h.b16 %v938
        %v1080 = vunpack.c.l.b16 %v939
        %v1081 = vunpack.c.h.b16 %v939
        %v1082 = vunpack.c.l.b16 %v940
        %v1083 = vunpack.c.h.b16 %v940
        %v1084 = vunpack.c.l.b16 %v941
        %v1085 = vunpack.c.h.b16 %v941
        %v1086 = vunpack.c.l.b16 %v942
        %v1087 = vunpack.c.h.b16 %v942
        %v1088 = vpack.c.b16 %v1026, %v1024
        %v1089 = vpack.c.b16 %v1027, %v1025
        %v1090 = vpack.c.b16 %v1030, %v1028
        %v1091 = vpack.c.b16 %v1031, %v1029
        %v1092 = vpack.c.b16 %v1034, %v1032
        %v1093 = vpack.c.b16 %v1035, %v1033
        %v1094 = vpack.c.b16 %v1038, %v1036
        %v1095 = vpack.c.b16 %v1039, %v1037
        %v1096 = vpack.c.b16 %v1042, %v1040
        %v1097 = vpack.c.b16 %v1043, %v1041
        %v1098 = vpack.c.b16 %v1046, %v1044
        %v1099 = vpack.c.b16 %v1047, %v1045
        %v1100 = vpack.c.b16 %v1050, %v1048
        %v1101 = vpack.c.b16 %v1051, %v1049
        %v1102 = vpack.c.b16 %v1054, %v1052
        %v1103 = vpack.c.b16 %v1055, %v1053
        %v1104 = vpack.c.b16 %v1058, %v1056
        %v1105 = vpack.c.b16 %v1059, %v1057
        %v1106 = vpack.c.b16 %v1062, %v1060
        %v1107 = vpack.c.b16 %v1063, %v1061
        %v1108 = vpack.c.b16 %v1066, %v1064
        %v1109 = vpack.c.b16 %v1067, %v1065
        %v1110 = vpack.c.b16 %v1070, %v1068
        %v1111 = vpack.c.b16 %v1071, %v1069
        %v1112 = vpack.c.b16 %v1074, %v1072
        %v1113 = vpack.c.b16 %v1075, %v1073
        %v1114 = vpack.c.b16 %v1078, %v1076
        %v1115 = vpack.c.b16 %v1079, %v1077
        %v1116 = vpack.c.b16 %v1082, %v1080
        %v1117 = vpack.c.b16 %v1083, %v1081
        %v1118 = vpack.c.b16 %v1086, %v1084
        %v1119 = vpack.c.b16 %v1087, %v1085
        %1152 = vmatprep.subr.bf16.mxu0 0
        %1153 = vmatpush1.bf16.msra.mxu0 %v944
        %1154 = vmatprep.subr.bf16.mxu0 0
        %1155 = vmatpush1.bf16.msra.mxu0 %v945
        %1156 = vmatprep.subr.bf16.mxu0 0
        %1157 = vmatpush1.bf16.msra.mxu0 %v946
        %1158 = vmatprep.subr.bf16.mxu0 0
        %1159 = vmatpush1.bf16.msra.mxu0 %v947
        %1160 = vmatprep.subr.bf16.mxu0 0
        %1161 = vmatpush1.bf16.msra.mxu0 %v948
        %1162 = vmatprep.subr.bf16.mxu0 0
        %1163 = vmatpush1.bf16.msra.mxu0 %v949
        %1164 = vmatprep.subr.bf16.mxu0 0
        %1165 = vmatpush1.bf16.msra.mxu0 %v950
        %1166 = vmatprep.subr.bf16.mxu0 0
        %1167 = vmatpush1.bf16.msra.mxu0 %v951
        %1168 = vmatprep.subr.bf16.mxu0 0
        %1169 = vmatpush1.bf16.msra.mxu0 %v952
        %1170 = vmatprep.subr.bf16.mxu0 0
        %1171 = vmatpush1.bf16.msra.mxu0 %v953
        %1172 = vmatprep.subr.bf16.mxu0 0
        %1173 = vmatpush1.bf16.msra.mxu0 %v954
        %1174 = vmatprep.subr.bf16.mxu0 0
        %1175 = vmatpush1.bf16.msra.mxu0 %v955
        %1176 = vmatprep.subr.bf16.mxu0 0
        %1177 = vmatpush1.bf16.msra.mxu0 %v956
        %1178 = vmatprep.subr.bf16.mxu0 0
        %1179 = vmatpush1.bf16.msra.mxu0 %v957
        %1180 = vmatprep.subr.bf16.mxu0 0
        %1181 = vmatpush1.bf16.msra.mxu0 %v958
        %1182 = vmatprep.subr.bf16.mxu0 0
        %1183 = vmatpush1.bf16.msra.mxu0 %v959
        %1184 = vmatprep.mubr.bf16.mxu0 %v1089
        %1185 = vmatmul.mubr.bf16.gmra.mrb[0].mxu0 %v1088
        %v1186 = vpop.f32.mrb[0].mxu0
        %v1187 = vadd.f32 %v960, %v1186
        %v1188 = vpop.f32.mrb[0].mxu0
        %v1189 = vpop.f32.mrb[0].mxu0
        %v1190 = vadd.f32 %v961, %v1189
        %v1191 = vpop.f32.mrb[0].mxu0
        %1192 = vmatprep.mubr.bf16.mxu0 %v1091
        %1193 = vmatmul.mubr.bf16.gmra.mrb[0].mxu0 %v1090
        %v1194 = vpop.f32.mrb[0].mxu0
        %v1195 = vadd.f32 %v962, %v1194
        %v1196 = vpop.f32.mrb[0].mxu0
        %v1197 = vpop.f32.mrb[0].mxu0
        %v1198 = vadd.f32 %v963, %v1197
        %v1199 = vpop.f32.mrb[0].mxu0
        %1200 = vmatprep.mubr.bf16.mxu0 %v1093
        %1201 = vmatmul.mubr.bf16.gmra.mrb[0].mxu0 %v1092
        %v1202 = vpop.f32.mrb[0].mxu0
        %v1203 = vadd.f32 %v964, %v1202
        %v1204 = vpop.f32.mrb[0].mxu0
        %v1205 = vpop.f32.mrb[0].mxu0
        %v1206 = vadd.f32 %v965, %v1205
        %v1207 = vpop.f32.mrb[0].mxu0
        %1208 = vmatprep.mubr.bf16.mxu0 %v1095
        %1209 = vmatmul.mubr.bf16.gmra.mrb[0].mxu0 %v1094
        %v1210 = vpop.f32.mrb[0].mxu0
        %v1211 = vadd.f32 %v966, %v1210
        %v1212 = vpop.f32.mrb[0].mxu0
        %v1213 = vpop.f32.mrb[0].mxu0
        %v1214 = vadd.f32 %v967, %v1213
        %v1215 = vpop.f32.mrb[0].mxu0
        %1216 = vmatprep.mubr.bf16.mxu0 %v1097
        %1217 = vmatmul.mubr.bf16.gmra.mrb[0].mxu0 %v1096
        %v1218 = vpop.f32.mrb[0].mxu0
        %v1219 = vadd.f32 %v968, %v1218
        %v1220 = vpop.f32.mrb[0].mxu0
        %v1221 = vpop.f32.mrb[0].mxu0
        %v1222 = vadd.f32 %v969, %v1221
        %v1223 = vpop.f32.mrb[0].mxu0
        %1224 = vmatprep.mubr.bf16.mxu0 %v1099
        %1225 = vmatmul.mubr.bf16.gmra.mrb[0].mxu0 %v1098
        %v1226 = vpop.f32.mrb[0].mxu0
        %v1227 = vadd.f32 %v970, %v1226
        %v1228 = vpop.f32.mrb[0].mxu0
        %v1229 = vpop.f32.mrb[0].mxu0
        %v1230 = vadd.f32 %v971, %v1229
        %v1231 = vpop.f32.mrb[0].mxu0
        %1232 = vmatprep.mubr.bf16.mxu0 %v1101
        %1233 = vmatmul.mubr.bf16.gmra.mrb[0].mxu0 %v1100
        %v1234 = vpop.f32.mrb[0].mxu0
        %v1235 = vadd.f32 %v972, %v1234
        %v1236 = vpop.f32.mrb[0].mxu0
        %v1237 = vpop.f32.mrb[0].mxu0
        %v1238 = vadd.f32 %v973, %v1237
        %v1239 = vpop.f32.mrb[0].mxu0
        %1240 = vmatprep.mubr.bf16.mxu0 %v1103
        %1241 = vmatmul.mubr.bf16.gmra.mrb[0].mxu0 %v1102
        %v1242 = vpop.f32.mrb[0].mxu0
        %v1243 = vadd.f32 %v974, %v1242
        %v1244 = vpop.f32.mrb[0].mxu0
        %v1245 = vpop.f32.mrb[0].mxu0
        %v1246 = vadd.f32 %v975, %v1245
        %v1247 = vpop.f32.mrb[0].mxu0
        %1248 = vmatprep.mubr.bf16.mxu0 %v1105
        %1249 = vmatmul.mubr.bf16.gmra.mrb[0].mxu0 %v1104
        %v1250 = vpop.f32.mrb[0].mxu0
        %v1251 = vadd.f32 %v976, %v1250
        %v1252 = vpop.f32.mrb[0].mxu0
        %v1253 = vpop.f32.mrb[0].mxu0
        %v1254 = vadd.f32 %v977, %v1253
        %v1255 = vpop.f32.mrb[0].mxu0
        %1256 = vmatprep.mubr.bf16.mxu0 %v1107
        %1257 = vmatmul.mubr.bf16.gmra.mrb[0].mxu0 %v1106
        %v1258 = vpop.f32.mrb[0].mxu0
        %v1259 = vadd.f32 %v978, %v1258
        %v1260 = vpop.f32.mrb[0].mxu0
        %v1261 = vpop.f32.mrb[0].mxu0
        %v1262 = vadd.f32 %v979, %v1261
        %v1263 = vpop.f32.mrb[0].mxu0
        %1264 = vmatprep.mubr.bf16.mxu0 %v1109
        %1265 = vmatmul.mubr.bf16.gmra.mrb[0].mxu0 %v1108
        %v1266 = vpop.f32.mrb[0].mxu0
        %v1267 = vadd.f32 %v980, %v1266
        %v1268 = vpop.f32.mrb[0].mxu0
        %v1269 = vpop.f32.mrb[0].mxu0
        %v1270 = vadd.f32 %v981, %v1269
        %v1271 = vpop.f32.mrb[0].mxu0
        %1272 = vmatprep.mubr.bf16.mxu0 %v1111
        %1273 = vmatmul.mubr.bf16.gmra.mrb[0].mxu0 %v1110
        %v1274 = vpop.f32.mrb[0].mxu0
        %v1275 = vadd.f32 %v982, %v1274
        %v1276 = vpop.f32.mrb[0].mxu0
        %v1277 = vpop.f32.mrb[0].mxu0
        %v1278 = vadd.f32 %v983, %v1277
        %v1279 = vpop.f32.mrb[0].mxu0
        %1280 = vmatprep.mubr.bf16.mxu0 %v1113
        %1281 = vmatmul.mubr.bf16.gmra.mrb[0].mxu0 %v1112
        %v1282 = vpop.f32.mrb[0].mxu0
        %v1283 = vadd.f32 %v984, %v1282
        %v1284 = vpop.f32.mrb[0].mxu0
        %v1285 = vpop.f32.mrb[0].mxu0
        %v1286 = vadd.f32 %v985, %v1285
        %v1287 = vpop.f32.mrb[0].mxu0
        %1288 = vmatprep.mubr.bf16.mxu0 %v1115
        %1289 = vmatmul.mubr.bf16.gmra.mrb[0].mxu0 %v1114
        %v1290 = vpop.f32.mrb[0].mxu0
        %v1291 = vadd.f32 %v986, %v1290
        %v1292 = vpop.f32.mrb[0].mxu0
        %v1293 = vpop.f32.mrb[0].mxu0
        %v1294 = vadd.f32 %v987, %v1293
        %v1295 = vpop.f32.mrb[0].mxu0
        %1296 = vmatprep.mubr.bf16.mxu0 %v1117
        %1297 = vmatmul.mubr.bf16.gmra.mrb[0].mxu0 %v1116
        %v1298 = vpop.f32.mrb[0].mxu0
        %v1299 = vadd.f32 %v988, %v1298
        %v1300 = vpop.f32.mrb[0].mxu0
        %v1301 = vpop.f32.mrb[0].mxu0
        %v1302 = vadd.f32 %v989, %v1301
        %v1303 = vpop.f32.mrb[0].mxu0
        %1304 = vmatprep.mubr.bf16.mxu0 %v1119
        %1305 = vmatmul.mubr.bf16.gmra.mrb[0].mxu0 %v1118
        %v1306 = vpop.f32.mrb[0].mxu0
        %v1307 = vadd.f32 %v990, %v1306
        %v1308 = vpop.f32.mrb[0].mxu0
        %v1309 = vpop.f32.mrb[0].mxu0
        %v1310 = vadd.f32 %v991, %v1309
        %v1311 = vpop.f32.mrb[0].mxu0
        %1312 = vdwg.mxu0
        %v1313 = vpack.c.bf16 %v1190, %v1187
        %v1314 = vpack.c.bf16 %v1198, %v1195
        %v1315 = vpack.c.bf16 %v1206, %v1203
        %v1316 = vpack.c.bf16 %v1214, %v1211
        %v1317 = vpack.c.bf16 %v1222, %v1219
        %v1318 = vpack.c.bf16 %v1230, %v1227
        %v1319 = vpack.c.bf16 %v1238, %v1235
        %v1320 = vpack.c.bf16 %v1246, %v1243
        %v1321 = vpack.c.bf16 %v1254, %v1251
        %v1322 = vpack.c.bf16 %v1262, %v1259
        %v1323 = vpack.c.bf16 %v1270, %v1267
        %v1324 = vpack.c.bf16 %v1278, %v1275
        %v1325 = vpack.c.bf16 %v1286, %v1283
        %v1326 = vpack.c.bf16 %v1294, %v1291
        %v1327 = vpack.c.bf16 %v1302, %v1299
        %v1328 = vpack.c.bf16 %v1310, %v1307
        %s1329 = sshra.s32 %s160, 4
        %s1330 = sand.u32 %s160, 15
        %s1331 = smul.addr %s1329, 8
        %s1332 = scalar_lea.vmem [#allocation2], %s1331
        %1333 = vst [vmem:[%s1332] sm:$0xff] %v1313
        %1334 = vst [vmem:[%s1332 + $0x8] sm:$0xff] %v1314
        %1335 = vst [vmem:[%s1332 + $0x10] sm:$0xff] %v1315
        %1336 = vst [vmem:[%s1332 + $0x18] sm:$0xff] %v1316
        %1337 = vst [vmem:[%s1332 + $0x20] sm:$0xff] %v1317
        %1338 = vst [vmem:[%s1332 + $0x28] sm:$0xff] %v1318
        %1339 = vst [vmem:[%s1332 + $0x30] sm:$0xff] %v1319
        %1340 = vst [vmem:[%s1332 + $0x38] sm:$0xff] %v1320
        %1341 = vst [vmem:[%s1332 + $0x40] sm:$0xff] %v1321
        %1342 = vst [vmem:[%s1332 + $0x48] sm:$0xff] %v1322
        %1343 = vst [vmem:[%s1332 + $0x50] sm:$0xff] %v1323
        %1344 = vst [vmem:[%s1332 + $0x58] sm:$0xff] %v1324
        %1345 = vst [vmem:[%s1332 + $0x60] sm:$0xff] %v1325
        %1346 = vst [vmem:[%s1332 + $0x68] sm:$0xff] %v1326
        %1347 = vst [vmem:[%s1332 + $0x70] sm:$0xff] %v1327
        %1348 = vst [vmem:[%s1332 + $0x78] sm:$0xff] %v1328
        %1349 = vst [vmem:[%s157] sm:$0xff] %v1187
        %1350 = vst [vmem:[%s157 + $0x8] sm:$0xff] %v1190
        %1351 = vst [vmem:[%s157 + $0x10] sm:$0xff] %v1195
        %1352 = vst [vmem:[%s157 + $0x18] sm:$0xff] %v1198
        %1353 = vst [vmem:[%s157 + $0x20] sm:$0xff] %v1203
        %1354 = vst [vmem:[%s157 + $0x28] sm:$0xff] %v1206
        %1355 = vst [vmem:[%s157 + $0x30] sm:$0xff] %v1211
        %1356 = vst [vmem:[%s157 + $0x38] sm:$0xff] %v1214
        %1357 = vst [vmem:[%s157 + $0x40] sm:$0xff] %v1219
        %1358 = vst [vmem:[%s157 + $0x48] sm:$0xff] %v1222
        %1359 = vst [vmem:[%s157 + $0x50] sm:$0xff] %v1227
        %1360 = vst [vmem:[%s157 + $0x58] sm:$0xff] %v1230
        %1361 = vst [vmem:[%s157 + $0x60] sm:$0xff] %v1235
        %1362 = vst [vmem:[%s157 + $0x68] sm:$0xff] %v1238
        %1363 = vst [vmem:[%s157 + $0x70] sm:$0xff] %v1243
        %1364 = vst [vmem:[%s157 + $0x78] sm:$0xff] %v1246
        %1365 = vst [vmem:[%s157 + $0x80] sm:$0xff] %v1251
        %1366 = vst [vmem:[%s157 + $0x88] sm:$0xff] %v1254
        %1367 = vst [vmem:[%s157 + $0x90] sm:$0xff] %v1259
        %1368 = vst [vmem:[%s157 + $0x98] sm:$0xff] %v1262
        %1369 = vst [vmem:[%s157 + $0xa0] sm:$0xff] %v1267
        %1370 = vst [vmem:[%s157 + $0xa8] sm:$0xff] %v1270
        %1371 = vst [vmem:[%s157 + $0xb0] sm:$0xff] %v1275
        %1372 = vst [vmem:[%s157 + $0xb8] sm:$0xff] %v1278
        %1373 = vst [vmem:[%s157 + $0xc0] sm:$0xff] %v1283
        %1374 = vst [vmem:[%s157 + $0xc8] sm:$0xff] %v1286
        %1375 = vst [vmem:[%s157 + $0xd0] sm:$0xff] %v1291
        %1376 = vst [vmem:[%s157 + $0xd8] sm:$0xff] %v1294
        %1377 = vst [vmem:[%s157 + $0xe0] sm:$0xff] %v1299
        %1378 = vst [vmem:[%s157 + $0xe8] sm:$0xff] %v1302
        %1379 = vst [vmem:[%s157 + $0xf0] sm:$0xff] %v1307
        %1380 = vst [vmem:[%s157 + $0xf8] sm:$0xff] %v1310
      $region40: #{gnn_forward.3} parent=27 // pred_fallthru
        _
      %s1381 = smul.u32 32, %s18
      %p1382 = scmp.lt.s32.totalorder %s1381, 31
      %s1383 = scalar_select %p1382, %s1381, 31
      %s1384 = smul.addr %s1383, 8
      %s1385 = scalar_lea.vmem %s2, %s1384
      // Predicated region
      $region41: #{gnn_forward.3} parent=27 // pred_check
        %p1386 = pneg %p90
      $region42: #{gnn_forward.3} parent=27 // pred_check_branch
        %1388 = sbr.rel (%p1386) target = $region44
      $region43: #{gnn_forward.3} parent=27 // pred_region
        %s1389 = smul.u32 32, %s18
      $region44: #{gnn_forward.3} parent=27 // pred_fallthru
        _
      // Predicated region
      $region45: #{gnn_forward.3} parent=27 // pred_check
        %p1390 = pneg %p90
      $region46: #{gnn_forward.3} parent=27 // pred_check_branch
        %1392 = sbr.rel (%p1390) target = $region48
      $region47: #{gnn_forward.3} parent=27 // pred_region
        %s1393 = smul.u32 32, %s18
        %p1394 = scmp.lt.s32.totalorder %s1393, 31
        %s1395 = scalar_select %p1394, %s1393, 31
        %s1396 = smul.addr %s1395, 8
        %s1397 = scalar_lea.vmem %s2, %s1396
      $region48: #{gnn_forward.3} parent=27 // pred_fallthru
        _
    $region28: #{gnn_forward.3} parent=5 // pred_fallthru
      _
    %p1398 = scmp.le.s32.totalorder 2, %s8
    // Predicated region
    $region49: #{gnn_forward.3} parent=5 // pred_check
      %p1399 = pneg %p1398
    $region50: #{gnn_forward.3} parent=5 // pred_check_branch
      %1401 = sbr.rel (%p1399) target = $region52
    $region51: #{gnn_forward.3} parent=5 // pred_region
      %s1402 = ssub.s32 %s8, 2
    $region52: #{gnn_forward.3} parent=5 // pred_fallthru
      _
  $region6: #{gnn_forward.3} parent=0 // loop_footer
    %s12 = sadd.s32 1, %s8
  $region7: #{gnn_forward.3} parent=0 // loop_footer_branch
    %7 = sbr.rel target = $region3
  $region8: #{gnn_forward.3} parent=0 // loop_exit
    _

</llo_original>
